<compile_context>
chip_gen: v5e
topology: v5e:2x2
jax: 0.10.0
libtpu: 0.0.40
codegen_flags: <defaults>
</compile_context>

<pallas_src>
import math
from functools import partial

import jax
import jax.numpy as jnp
from jax import lax
from jax.experimental import pallas as pl
from jax.experimental.pallas import tpu as pltpu  # noqa: F401  (for the v7x grid variant, see TODO below)

CONFIG = dict(
    hidden_size=32,
    bert_num_attention_heads=4,
    bert_layer_norm_eps=1e-5,
    bert_hidden_act="relu",          # activation of the TransformerEncoderLayer
    table_y_embedding_len=10,
    table_x_embedding_len=10,
    postnet_transformer_layers=1,
    postnet_gru_layers=0,
    add_postnet_table_embeddings=True,
    add_postnet_layernorm=True,
    use_reasoning=False,
    use_heavy_postnet=False,
)

LANES = 128          # TPU lane width: every f32 feature row is carried at this width
_NEG = -1e9          # finite additive-mask stand-in for -inf
_PROJ_LN_EPS = 1e-5  # nn.LayerNorm default eps (proj_ln); transformer uses cfg eps


# ----------------------------------------------------------------------------
# In-kernel helper: LayerNorm over the first `width` lanes of a zero-padded row
# ----------------------------------------------------------------------------
def _layernorm_padded(x, g, b, eps, width):
    """x: (rows, LANES) with lanes >= width exactly zero; g, b: (1, LANES) with
    lanes >= width exactly zero.  Uses sum/width and E[x^2]-mu^2 so the zero-padded
    lanes contribute nothing to the statistics, and the output's padded lanes stay
    exactly zero (g = b = 0 there)."""
    inv_w = 1.0 / width
    mu = jnp.sum(x, axis=-1, keepdims=True) * inv_w
    var = jnp.maximum(jnp.sum(x * x, axis=-1, keepdims=True) * inv_w - mu * mu, 0.0)
    return (x - mu) * lax.rsqrt(var + eps) * g + b


# ----------------------------------------------------------------------------
# ONE fused kernel: emb-gather + add + proj_ln[0] + TransformerEncoderLayer
# ----------------------------------------------------------------------------
def postnet_fused_kernel(ids_y_ref, ids_x_ref, qbid_ref, kbid_ref, x_ref,
                         tab_ref, wqkv_ref, wo_ref, w1_ref, w2_ref, vecs_ref,
                         o_ref, *, hidden, num_heads, ty_len, proj_eps, tf_eps):
    N = x_ref.shape[0]
    H = hidden
    FF = 4 * H
    hd = H // num_heads
    T = tab_ref.shape[0]                 # padded (table_y_len + table_x_len)

    # ---- packed bias / LayerNorm vectors: (12, LANES), rows zero beyond their width ----
    vec = vecs_ref[...]
    proj_g, proj_b = vec[0:1], vec[1:2]
    bq, bk, bv = vec[2:3, :H], vec[3:4, :H], vec[4:5, :H]   # bq pre-scaled by 1/sqrt(hd)
    bo = vec[5:6]
    ln1_g, ln1_b = vec[6:7], vec[7:8]
    b1 = vec[8:9, :FF]
    b2 = vec[9:10]
    ln2_g, ln2_b = vec[10:11], vec[11:12]

    # ---- x + table_y[ids_y] + table_x[ids_x]  (one-hot "two-hot" MXU gather) ----
    iota_t = lax.broadcasted_iota(jnp.int32, (N, T), 1)
    two_hot = ((ids_y_ref[...] == iota_t).astype(jnp.float32)
               + ((ids_x_ref[...] + ty_len) == iota_t).astype(jnp.float32))      # (N, T)
    xf = x_ref[...] + jnp.dot(two_hot, tab_ref[...],
                              preferred_element_type=jnp.float32)                # (N, LANES)

    # ---- proj_ln[0] ----
    xf = _layernorm_padded(xf, proj_g, proj_b, proj_eps, H)

    # ---- additive attention bias, built in-kernel (no N^2 HBM buffer) ----
    # kbid[k] = batch id of key k, or -1 if key k is padding (src_key_padding_mask);
    # qbid[q] = batch id of query q.  Equal  -> 0, else -1e9: block-diagonal over
    # batches + key-padding mask.  NOTE: if a sequence is ALL padding, its rows
    # become uniform over every key after max-subtraction (PyTorch would give NaN);
    # not exercised here.
    bias = jnp.where(qbid_ref[...] == kbid_ref[...], 0.0, _NEG).astype(jnp.float32)  # (N, N)

    # ---- self-attention: 3 small dots, lane-masked per-head dots, deferred norm ----
    xh = xf[:, :H]                         # offset-0 lane slice: no data movement
    w3 = wqkv_ref[...]                     # (3H, H), sublane slices are vreg-aligned
    q = jnp.dot(xh, w3[0:H], preferred_element_type=jnp.float32) + bq          # (N, H)
    k = jnp.dot(xh, w3[H:2 * H], preferred_element_type=jnp.float32) + bk      # (N, H)
    v = jnp.dot(xh, w3[2 * H:3 * H], preferred_element_type=jnp.float32) + bv  # (N, H)

    lane_i = lax.broadcasted_iota(jnp.int32, (1, H), 1)
    ctx = jnp.zeros((N, H), jnp.float32)
    for h in range(num_heads):             # static unroll over 4 tiny heads
        head_mask = (lane_i >= h * hd) & (lane_i < (h + 1) * hd)               # (1, H)
        s = jnp.einsum("qd,kd->qk", jnp.where(head_mask, q, 0.0), k,
                       preferred_element_type=jnp.float32) + bias              # (N, N)
        s = s - jnp.max(s, axis=-1, keepdims=True)
        p = jnp.exp(s)
        r = pl.reciprocal(jnp.sum(p, axis=-1, keepdims=True), approx=True)     # (N, 1)
        ctx = ctx + jnp.dot(p, jnp.where(head_mask, v, 0.0),
                            preferred_element_type=jnp.float32) * r            # (N, H)
    attn = jnp.dot(ctx, wo_ref[...], preferred_element_type=jnp.float32) + bo  # (N, LANES)

    h1 = _layernorm_padded(xf + attn, ln1_g, ln1_b, tf_eps, H)

    # ---- feed-forward ----
    ff = jnp.dot(h1[:, :H], w1_ref[...], preferred_element_type=jnp.float32) + b1   # (N, FF)
    ff = jnp.maximum(ff, 0.0)              # activation = 'relu'
    ff = jnp.dot(ff, w2_ref[...], preferred_element_type=jnp.float32) + b2          # (N, LANES)

    # lane-dense (N, LANES) store; lanes >= H are exact zeros and get sliced off outside.
    o_ref[...] = _layernorm_padded(h1 + ff, ln2_g, ln2_b, tf_eps, H).astype(o_ref.dtype)


# ----------------------------------------------------------------------------
# Wrapper: single un-gridded pallas_call (whole arrays resident in VMEM)
# ----------------------------------------------------------------------------
def postnet_forward(kparams, cfg, sequence_output, gcn_info_vec, mask,
                    table_position_ids, passage_number_indices):
    # Config branches realized by this fused kernel:
    assert not cfg["use_heavy_postnet"] and not cfg["use_reasoning"]
    assert cfg["add_postnet_table_embeddings"] and cfg["add_postnet_layernorm"]
    assert cfg["postnet_transformer_layers"] == 1 and cfg["postnet_gru_layers"] == 0
    # TODO(synk): postnet_gru_layers > 0 needs ResidualGRU (sequential recurrence,
    # undefined upstream); the reasoning / TensorMerger branch is likewise unused here.
    del gcn_info_vec, passage_number_indices

    B, S, H = sequence_output.shape
    N = B * S
    assert H <= LANES and 4 * H <= LANES

    # ---- layout plumbing (free / tiny fused XLA ops outside the kernel) ----
    x2d = sequence_output.reshape(N, H).astype(jnp.float32)
    x_pad = jnp.pad(x2d, ((0, 0), (0, LANES - H)))               # lane-dense input

    ids_y = table_position_ids[:, 0, :].reshape(N, 1).astype(jnp.int32)
    ids_x = table_position_ids[:, 1, :].reshape(N, 1).astype(jnp.int32)

    batch_of = jnp.arange(N, dtype=jnp.int32) // S
    qbid = batch_of.reshape(N, 1)
    # key batch id, or -1 if the key is padding (mask==True -> ignore as key);
    # -1 never equals a query batch id, so padded keys get the -1e9 bias.
    kbid = jnp.where(mask.reshape(N), -1, batch_of).astype(jnp.int32).reshape(1, N)

    kernel = partial(postnet_fused_kernel,
                     hidden=H,
                     num_heads=cfg["bert_num_attention_heads"],
                     ty_len=cfg["table_y_embedding_len"],
                     proj_eps=_PROJ_LN_EPS,
                     tf_eps=cfg["bert_layer_norm_eps"])

    # No grid / no BlockSpecs: one kernel invocation over the full (tiny) arrays.
    # TODO(synk): when B grows beyond toy size, add a batch grid axis with
    # compiler_params=pltpu.CompilerParams(dimension_semantics=("parallel",)) so
    # v7x's second TensorCore is used; keep this grid-less form on v5e/v6e at tiny B.
    out_pad = pl.pallas_call(
        kernel,
        out_shape=jax.ShapeDtypeStruct((N, LANES), jnp.float32),
    )(ids_y, ids_x, qbid, kbid, x_pad,
      kparams["tables"], kparams["wqkv"], kparams["wo_t"],
      kparams["w1_t"], kparams["w2_t"], kparams["vecs"])

    return out_pad[:, :H].reshape(B, S, H).astype(sequence_output.dtype)


# ----------------------------------------------------------------------------
# Parameters: PyTorch-layout init + one-time host-side re-layout for the kernel
# ----------------------------------------------------------------------------
def init_params(key, cfg):
    H = cfg["hidden_size"]
    ks = jax.random.split(key, 10)

    def nrm(k, shape, scale=0.02):
        return (scale * jax.random.normal(k, shape)).astype(jnp.float32)

    p = {}
    ey = nrm(ks[0], (cfg["table_y_embedding_len"], H))
    ex = nrm(ks[1], (cfg["table_x_embedding_len"], H))
    p["table_y_embedding"] = ey.at[0].set(0.0)     # padding_idx=0
    p["table_x_embedding"] = ex.at[0].set(0.0)     # padding_idx=0
    p["proj_ln0_gamma"] = jnp.ones((H,), jnp.float32)
    p["proj_ln0_beta"] = jnp.zeros((H,), jnp.float32)
    # one nn.TransformerEncoderLayer
    p["attn_in_proj_w"] = nrm(ks[2], (3 * H, H))   # stacked [Wq; Wk; Wv]
    p["attn_in_proj_b"] = nrm(ks[3], (3 * H,))
    p["attn_out_proj_w"] = nrm(ks[4], (H, H))
    p["attn_out_proj_b"] = nrm(ks[5], (H,))
    p["ln1_gamma"] = jnp.ones((H,), jnp.float32)
    p["ln1_beta"] = jnp.zeros((H,), jnp.float32)
    p["ffn_w1"] = nrm(ks[6], (4 * H, H))
    p["ffn_b1"] = nrm(ks[7], (4 * H,))
    p["ffn_w2"] = nrm(ks[8], (H, 4 * H))
    p["ffn_b2"] = nrm(ks[9], (H,))
    p["ln2_gamma"] = jnp.ones((H,), jnp.float32)
    p["ln2_beta"] = jnp.zeros((H,), jnp.float32)
    return p


def pack_params(p, cfg):
    """One-time host-side re-layout: pre-transposed matmul weights zero-padded to the
    128-lane container (so the kernel's datapath and output are lane-dense), a
    zero-padded concatenated embedding table, the attention scale folded into Wq/bq,
    and a single packed (12, 128) bias/LayerNorm array (zero beyond each row's width)."""
    H = cfg["hidden_size"]
    nh = cfg["bert_num_attention_heads"]
    hd = H // nh
    FF = 4 * H
    ty, tx = cfg["table_y_embedding_len"], cfg["table_x_embedding_len"]
    t_pad = ((ty + tx + 7) // 8) * 8          # pad rows to a sublane multiple
    assert H <= LANES and FF <= LANES

    tables = jnp.zeros((t_pad, LANES), jnp.float32)
    tables = tables.at[:ty, :H].set(p["table_y_embedding"])
    tables = tables.at[ty:ty + tx, :H].set(p["table_x_embedding"])

    scale = 1.0 / math.sqrt(hd)
    Wq = p["attn_in_proj_w"][0:H]
    Wk = p["attn_in_proj_w"][H:2 * H]
    Wv = p["attn_in_proj_w"][2 * H:3 * H]
    wqkv = jnp.concatenate([Wq.T * scale, Wk.T, Wv.T], axis=0)    # (3H, H)

    wo_t = jnp.zeros((H, LANES), jnp.float32).at[:, :H].set(p["attn_out_proj_w"].T)
    w1_t = p["ffn_w1"].T                                           # (H, 4H)
    w2_t = jnp.zeros((FF, LANES), jnp.float32).at[:, :H].set(p["ffn_w2"].T)

    vecs = jnp.zeros((12, LANES), jnp.float32)
    vecs = vecs.at[0, :H].set(p["proj_ln0_gamma"])
    vecs = vecs.at[1, :H].set(p["proj_ln0_beta"])
    vecs = vecs.at[2, :H].set(p["attn_in_proj_b"][0:H] * scale)   # bq (pre-scaled)
    vecs = vecs.at[3, :H].set(p["attn_in_proj_b"][H:2 * H])       # bk
    vecs = vecs.at[4, :H].set(p["attn_in_proj_b"][2 * H:3 * H])   # bv
    vecs = vecs.at[5, :H].set(p["attn_out_proj_b"])               # bo
    vecs = vecs.at[6, :H].set(p["ln1_gamma"])
    vecs = vecs.at[7, :H].set(p["ln1_beta"])
    vecs = vecs.at[8, :FF].set(p["ffn_b1"])
    vecs = vecs.at[9, :H].set(p["ffn_b2"])
    vecs = vecs.at[10, :H].set(p["ln2_gamma"])
    vecs = vecs.at[11, :H].set(p["ln2_beta"])

    return dict(tables=tables, wqkv=wqkv, wo_t=wo_t, w1_t=w1_t, w2_t=w2_t, vecs=vecs)


if __name__ == "__main__":
    cfg = CONFIG
    B, S, H = 2, 8, cfg["hidden_size"]

    key = jax.random.PRNGKey(0)
    k_x, k_g, k_p, k_ids = jax.random.split(key, 4)

    params = init_params(k_p, cfg)
    kparams = pack_params(params, cfg)

    sequence_output = jax.random.normal(k_x, (B, S, H), jnp.float32)
    gcn_info_vec = jax.random.normal(k_g, (B, S, H), jnp.float32)   # unused branch
    mask = jnp.zeros((B, S), jnp.bool_).at[:, S - 2:].set(True)     # last 2 keys = padding
    table_position_ids = jax.random.randint(k_ids, (B, 2, S), 0,
                                            cfg["table_y_embedding_len"])
    passage_number_indices = jnp.zeros((B, 4), jnp.int32)           # unused branch

    fwd = jax.jit(lambda x, m, ids: postnet_forward(
        kparams, cfg, x, gcn_info_vec, m, ids, passage_number_indices))
    out = jax.block_until_ready(fwd(sequence_output, mask, table_position_ids))

    assert out.shape == (B, S, H)
    assert bool(jnp.all(jnp.isfinite(out)))
    print("KERNEL_OK")
</pallas_src>

<mosaic_0001>
module attributes {stable_mosaic.version = 11 : i64} {
  func.func @postnet_fused_kernel(%arg0: memref<16x1xi32, #tpu.memory_space<vmem>>, %arg1: memref<16x1xi32, #tpu.memory_space<vmem>>, %arg2: memref<16x1xi32, #tpu.memory_space<vmem>>, %arg3: memref<1x16xi32, #tpu.memory_space<vmem>>, %arg4: memref<16x128xf32, #tpu.memory_space<vmem>>, %arg5: memref<24x128xf32, #tpu.memory_space<vmem>>, %arg6: memref<96x32xf32, #tpu.memory_space<vmem>>, %arg7: memref<32x128xf32, #tpu.memory_space<vmem>>, %arg8: memref<32x128xf32, #tpu.memory_space<vmem>>, %arg9: memref<128x128xf32, #tpu.memory_space<vmem>>, %arg10: memref<12x128xf32, #tpu.memory_space<vmem>>, %arg11: memref<16x128xf32, #tpu.memory_space<vmem>>) attributes {dimension_semantics = [], scalar_prefetch = 0 : i64, scratch_operands = 0 : i64, tpu.core_type = #tpu.core_type<tc>} {
    %c0 = arith.constant 0 : index
    %c0_0 = arith.constant 0 : index
    %0 = vector.load %arg10[%c0, %c0_0] : memref<12x128xf32, #tpu.memory_space<vmem>>, vector<12x128xf32>
    %1 = vector.extract_strided_slice %0 {offsets = [0, 0], sizes = [1, 128], strides = [1, 1]} : vector<12x128xf32> to vector<1x128xf32>
    %2 = vector.extract_strided_slice %0 {offsets = [1, 0], sizes = [1, 128], strides = [1, 1]} : vector<12x128xf32> to vector<1x128xf32>
    %3 = vector.extract_strided_slice %0 {offsets = [2, 0], sizes = [1, 32], strides = [1, 1]} : vector<12x128xf32> to vector<1x32xf32>
    %4 = vector.extract_strided_slice %0 {offsets = [3, 0], sizes = [1, 32], strides = [1, 1]} : vector<12x128xf32> to vector<1x32xf32>
    %5 = vector.extract_strided_slice %0 {offsets = [4, 0], sizes = [1, 32], strides = [1, 1]} : vector<12x128xf32> to vector<1x32xf32>
    %6 = vector.extract_strided_slice %0 {offsets = [5, 0], sizes = [1, 128], strides = [1, 1]} : vector<12x128xf32> to vector<1x128xf32>
    %7 = vector.extract_strided_slice %0 {offsets = [6, 0], sizes = [1, 128], strides = [1, 1]} : vector<12x128xf32> to vector<1x128xf32>
    %8 = vector.extract_strided_slice %0 {offsets = [7, 0], sizes = [1, 128], strides = [1, 1]} : vector<12x128xf32> to vector<1x128xf32>
    %9 = vector.extract_strided_slice %0 {offsets = [8, 0], sizes = [1, 128], strides = [1, 1]} : vector<12x128xf32> to vector<1x128xf32>
    %10 = vector.extract_strided_slice %0 {offsets = [9, 0], sizes = [1, 128], strides = [1, 1]} : vector<12x128xf32> to vector<1x128xf32>
    %11 = vector.extract_strided_slice %0 {offsets = [10, 0], sizes = [1, 128], strides = [1, 1]} : vector<12x128xf32> to vector<1x128xf32>
    %12 = vector.extract_strided_slice %0 {offsets = [11, 0], sizes = [1, 128], strides = [1, 1]} : vector<12x128xf32> to vector<1x128xf32>
    %13 = tpu.iota {dimensions = array<i32: 1>} : vector<16x24xi32>
    %c0_1 = arith.constant 0 : index
    %c0_2 = arith.constant 0 : index
    %14 = vector.load %arg0[%c0_1, %c0_2] : memref<16x1xi32, #tpu.memory_space<vmem>>, vector<16x1xi32>
    %15 = vector.broadcast %14 : vector<16x1xi32> to vector<16x24xi32>
    %16 = arith.cmpi eq, %15, %13 : vector<16x24xi32>
    %17 = arith.extui %16 : vector<16x24xi1> to vector<16x24xi32>
    %18 = arith.sitofp %17 : vector<16x24xi32> to vector<16x24xf32>
    %c0_3 = arith.constant 0 : index
    %c0_4 = arith.constant 0 : index
    %19 = vector.load %arg1[%c0_3, %c0_4] : memref<16x1xi32, #tpu.memory_space<vmem>>, vector<16x1xi32>
    %c10_i32 = arith.constant 10 : i32
    %20 = vector.broadcast %c10_i32 : i32 to vector<16x1xi32>
    %21 = arith.addi %19, %20 : vector<16x1xi32>
    %22 = vector.broadcast %21 : vector<16x1xi32> to vector<16x24xi32>
    %23 = arith.cmpi eq, %22, %13 : vector<16x24xi32>
    %24 = arith.extui %23 : vector<16x24xi1> to vector<16x24xi32>
    %25 = arith.sitofp %24 : vector<16x24xi32> to vector<16x24xf32>
    %26 = arith.addf %18, %25 : vector<16x24xf32>
    %c0_5 = arith.constant 0 : index
    %c0_6 = arith.constant 0 : index
    %27 = vector.load %arg4[%c0_5, %c0_6] : memref<16x128xf32, #tpu.memory_space<vmem>>, vector<16x128xf32>
    %c0_7 = arith.constant 0 : index
    %c0_8 = arith.constant 0 : index
    %28 = vector.load %arg5[%c0_7, %c0_8] : memref<24x128xf32, #tpu.memory_space<vmem>>, vector<24x128xf32>
    %cst = arith.constant dense<0.000000e+00> : vector<16x128xf32>
    %29 = tpu.matmul %26, %28, %cst {dimension_numbers = #tpu.dot_dimension_numbers<[1], [0], [0], [1], [0, 0, 1, 1], [], []>} : vector<16x24xf32>, vector<24x128xf32>, vector<16x128xf32> -> vector<16x128xf32>
    %30 = arith.addf %27, %29 : vector<16x128xf32>
    %cst_9 = arith.constant dense<0.000000e+00> : vector<16xf32>
    %31 = vector.multi_reduction <add>, %30, %cst_9 [1] : vector<16x128xf32> to vector<16xf32>
    %32 = vector.shape_cast %31 : vector<16xf32> to vector<16x1xf32>
    %cst_10 = arith.constant 3.125000e-02 : f32
    %33 = vector.broadcast %cst_10 : f32 to vector<16x1xf32>
    %34 = arith.mulf %32, %33 : vector<16x1xf32>
    %35 = arith.mulf %30, %30 : vector<16x128xf32>
    %cst_11 = arith.constant dense<0.000000e+00> : vector<16xf32>
    %36 = vector.multi_reduction <add>, %35, %cst_11 [1] : vector<16x128xf32> to vector<16xf32>
    %37 = vector.shape_cast %36 : vector<16xf32> to vector<16x1xf32>
    %cst_12 = arith.constant 3.125000e-02 : f32
    %38 = vector.broadcast %cst_12 : f32 to vector<16x1xf32>
    %39 = arith.mulf %37, %38 : vector<16x1xf32>
    %40 = arith.mulf %34, %34 : vector<16x1xf32>
    %41 = arith.subf %39, %40 : vector<16x1xf32>
    %cst_13 = arith.constant 0.000000e+00 : f32
    %42 = vector.broadcast %cst_13 : f32 to vector<16x1xf32>
    %43 = arith.maximumf %41, %42 : vector<16x1xf32>
    %44 = vector.broadcast %34 : vector<16x1xf32> to vector<16x128xf32>
    %45 = arith.subf %30, %44 : vector<16x128xf32>
    %cst_14 = arith.constant 9.99999974E-6 : f32
    %46 = vector.broadcast %cst_14 : f32 to vector<16x1xf32>
    %47 = arith.addf %43, %46 : vector<16x1xf32>
    %48 = math.rsqrt %47 : vector<16x1xf32>
    %49 = vector.broadcast %48 : vector<16x1xf32> to vector<16x128xf32>
    %50 = arith.mulf %45, %49 : vector<16x128xf32>
    %51 = vector.broadcast %1 : vector<1x128xf32> to vector<16x128xf32>
    %52 = arith.mulf %50, %51 : vector<16x128xf32>
    %53 = vector.broadcast %2 : vector<1x128xf32> to vector<16x128xf32>
    %54 = arith.addf %52, %53 : vector<16x128xf32>
    %c0_15 = arith.constant 0 : index
    %c0_16 = arith.constant 0 : index
    %55 = vector.load %arg2[%c0_15, %c0_16] : memref<16x1xi32, #tpu.memory_space<vmem>>, vector<16x1xi32>
    %c0_17 = arith.constant 0 : index
    %c0_18 = arith.constant 0 : index
    %56 = vector.load %arg3[%c0_17, %c0_18] : memref<1x16xi32, #tpu.memory_space<vmem>>, vector<1x16xi32>
    %57 = vector.broadcast %55 : vector<16x1xi32> to vector<16x16xi32>
    %58 = vector.broadcast %56 : vector<1x16xi32> to vector<16x16xi32>
    %59 = arith.cmpi eq, %57, %58 : vector<16x16xi32>
    %cst_19 = arith.constant 0.000000e+00 : f32
    %cst_20 = arith.constant -1.000000e+09 : f32
    %60 = vector.broadcast %cst_19 : f32 to vector<16x16xf32>
    %61 = vector.broadcast %cst_20 : f32 to vector<16x16xf32>
    %62 = arith.select %59, %60, %61 : vector<16x16xi1>, vector<16x16xf32>
    %63 = vector.extract_strided_slice %54 {offsets = [0, 0], sizes = [16, 32], strides = [1, 1]} : vector<16x128xf32> to vector<16x32xf32>
    %c0_21 = arith.constant 0 : index
    %c0_22 = arith.constant 0 : index
    %64 = vector.load %arg6[%c0_21, %c0_22] : memref<96x32xf32, #tpu.memory_space<vmem>>, vector<96x32xf32>
    %65 = vector.extract_strided_slice %64 {offsets = [0, 0], sizes = [32, 32], strides = [1, 1]} : vector<96x32xf32> to vector<32x32xf32>
    %cst_23 = arith.constant dense<0.000000e+00> : vector<16x32xf32>
    %66 = tpu.matmul %63, %65, %cst_23 {dimension_numbers = #tpu.dot_dimension_numbers<[1], [0], [0], [1], [0, 0, 1, 1], [], []>} : vector<16x32xf32>, vector<32x32xf32>, vector<16x32xf32> -> vector<16x32xf32>
    %67 = vector.broadcast %3 : vector<1x32xf32> to vector<16x32xf32>
    %68 = arith.addf %66, %67 : vector<16x32xf32>
    %69 = vector.extract_strided_slice %64 {offsets = [32, 0], sizes = [32, 32], strides = [1, 1]} : vector<96x32xf32> to vector<32x32xf32>
    %cst_24 = arith.constant dense<0.000000e+00> : vector<16x32xf32>
    %70 = tpu.matmul %63, %69, %cst_24 {dimension_numbers = #tpu.dot_dimension_numbers<[1], [0], [0], [1], [0, 0, 1, 1], [], []>} : vector<16x32xf32>, vector<32x32xf32>, vector<16x32xf32> -> vector<16x32xf32>
    %71 = vector.broadcast %4 : vector<1x32xf32> to vector<16x32xf32>
    %72 = arith.addf %70, %71 : vector<16x32xf32>
    %73 = vector.extract_strided_slice %64 {offsets = [64, 0], sizes = [32, 32], strides = [1, 1]} : vector<96x32xf32> to vector<32x32xf32>
    %cst_25 = arith.constant dense<0.000000e+00> : vector<16x32xf32>
    %74 = tpu.matmul %63, %73, %cst_25 {dimension_numbers = #tpu.dot_dimension_numbers<[1], [0], [0], [1], [0, 0, 1, 1], [], []>} : vector<16x32xf32>, vector<32x32xf32>, vector<16x32xf32> -> vector<16x32xf32>
    %75 = vector.broadcast %5 : vector<1x32xf32> to vector<16x32xf32>
    %76 = arith.addf %74, %75 : vector<16x32xf32>
    %77 = tpu.iota {dimensions = array<i32: 1>} : vector<1x32xi32>
    %cst_26 = arith.constant 0.000000e+00 : f32
    %78 = vector.broadcast %cst_26 : f32 to vector<16x32xf32>
    %c0_i32 = arith.constant 0 : i32
    %79 = vector.broadcast %c0_i32 : i32 to vector<1x32xi32>
    %80 = arith.cmpi sge, %77, %79 : vector<1x32xi32>
    %c8_i32 = arith.constant 8 : i32
    %81 = vector.broadcast %c8_i32 : i32 to vector<1x32xi32>
    %82 = arith.cmpi slt, %77, %81 : vector<1x32xi32>
    %83 = arith.andi %80, %82 : vector<1x32xi1>
    %cst_27 = arith.constant 0.000000e+00 : f32
    %84 = vector.shape_cast %83 : vector<1x32xi1> to vector<1x32xi1>
    %85 = vector.broadcast %84 : vector<1x32xi1> to vector<16x32xi1>
    %86 = vector.broadcast %cst_27 : f32 to vector<16x32xf32>
    %87 = arith.select %85, %68, %86 : vector<16x32xi1>, vector<16x32xf32>
    "tpu.trace_start"() <{level = 10 : i32, message = "qd,kd->qk"}> : () -> ()
    %cst_28 = arith.constant dense<0.000000e+00> : vector<16x16xf32>
    %88 = tpu.matmul %87, %72, %cst_28 {dimension_numbers = #tpu.dot_dimension_numbers<[1], [1], [0], [0], [0, 0, 1, 0], [], []>} : vector<16x32xf32>, vector<16x32xf32>, vector<16x16xf32> -> vector<16x16xf32>
    "tpu.trace_stop"() : () -> ()
    %89 = arith.addf %88, %62 : vector<16x16xf32>
    %cst_29 = arith.constant dense<0xFF800000> : vector<16xf32>
    %90 = vector.multi_reduction <maximumf>, %89, %cst_29 [1] : vector<16x16xf32> to vector<16xf32>
    %91 = vector.shape_cast %90 : vector<16xf32> to vector<16x1xf32>
    %92 = vector.broadcast %91 : vector<16x1xf32> to vector<16x16xf32>
    %93 = arith.subf %89, %92 : vector<16x16xf32>
    %94 = math.exp %93 : vector<16x16xf32>
    %cst_30 = arith.constant dense<0.000000e+00> : vector<16xf32>
    %95 = vector.multi_reduction <add>, %94, %cst_30 [1] : vector<16x16xf32> to vector<16xf32>
    %96 = vector.shape_cast %95 : vector<16xf32> to vector<16x1xf32>
    %97 = tpu.reciprocal %96 {approx = true} : vector<16x1xf32> -> vector<16x1xf32>
    %cst_31 = arith.constant 0.000000e+00 : f32
    %98 = vector.shape_cast %83 : vector<1x32xi1> to vector<1x32xi1>
    %99 = vector.broadcast %98 : vector<1x32xi1> to vector<16x32xi1>
    %100 = vector.broadcast %cst_31 : f32 to vector<16x32xf32>
    %101 = arith.select %99, %76, %100 : vector<16x32xi1>, vector<16x32xf32>
    %cst_32 = arith.constant dense<0.000000e+00> : vector<16x32xf32>
    %102 = tpu.matmul %94, %101, %cst_32 {dimension_numbers = #tpu.dot_dimension_numbers<[1], [0], [0], [1], [0, 0, 1, 1], [], []>} : vector<16x16xf32>, vector<16x32xf32>, vector<16x32xf32> -> vector<16x32xf32>
    %103 = vector.broadcast %97 : vector<16x1xf32> to vector<16x32xf32>
    %104 = arith.mulf %102, %103 : vector<16x32xf32>
    %105 = arith.addf %78, %104 : vector<16x32xf32>
    %c8_i32_33 = arith.constant 8 : i32
    %106 = vector.broadcast %c8_i32_33 : i32 to vector<1x32xi32>
    %107 = arith.cmpi sge, %77, %106 : vector<1x32xi32>
    %c16_i32 = arith.constant 16 : i32
    %108 = vector.broadcast %c16_i32 : i32 to vector<1x32xi32>
    %109 = arith.cmpi slt, %77, %108 : vector<1x32xi32>
    %110 = arith.andi %107, %109 : vector<1x32xi1>
    %cst_34 = arith.constant 0.000000e+00 : f32
    %111 = vector.shape_cast %110 : vector<1x32xi1> to vector<1x32xi1>
    %112 = vector.broadcast %111 : vector<1x32xi1> to vector<16x32xi1>
    %113 = vector.broadcast %cst_34 : f32 to vector<16x32xf32>
    %114 = arith.select %112, %68, %113 : vector<16x32xi1>, vector<16x32xf32>
    "tpu.trace_start"() <{level = 10 : i32, message = "qd,kd->qk"}> : () -> ()
    %cst_35 = arith.constant dense<0.000000e+00> : vector<16x16xf32>
    %115 = tpu.matmul %114, %72, %cst_35 {dimension_numbers = #tpu.dot_dimension_numbers<[1], [1], [0], [0], [0, 0, 1, 0], [], []>} : vector<16x32xf32>, vector<16x32xf32>, vector<16x16xf32> -> vector<16x16xf32>
    "tpu.trace_stop"() : () -> ()
    %116 = arith.addf %115, %62 : vector<16x16xf32>
    %cst_36 = arith.constant dense<0xFF800000> : vector<16xf32>
    %117 = vector.multi_reduction <maximumf>, %116, %cst_36 [1] : vector<16x16xf32> to vector<16xf32>
    %118 = vector.shape_cast %117 : vector<16xf32> to vector<16x1xf32>
    %119 = vector.broadcast %118 : vector<16x1xf32> to vector<16x16xf32>
    %120 = arith.subf %116, %119 : vector<16x16xf32>
    %121 = math.exp %120 : vector<16x16xf32>
    %cst_37 = arith.constant dense<0.000000e+00> : vector<16xf32>
    %122 = vector.multi_reduction <add>, %121, %cst_37 [1] : vector<16x16xf32> to vector<16xf32>
    %123 = vector.shape_cast %122 : vector<16xf32> to vector<16x1xf32>
    %124 = tpu.reciprocal %123 {approx = true} : vector<16x1xf32> -> vector<16x1xf32>
    %cst_38 = arith.constant 0.000000e+00 : f32
    %125 = vector.shape_cast %110 : vector<1x32xi1> to vector<1x32xi1>
    %126 = vector.broadcast %125 : vector<1x32xi1> to vector<16x32xi1>
    %127 = vector.broadcast %cst_38 : f32 to vector<16x32xf32>
    %128 = arith.select %126, %76, %127 : vector<16x32xi1>, vector<16x32xf32>
    %cst_39 = arith.constant dense<0.000000e+00> : vector<16x32xf32>
    %129 = tpu.matmul %121, %128, %cst_39 {dimension_numbers = #tpu.dot_dimension_numbers<[1], [0], [0], [1], [0, 0, 1, 1], [], []>} : vector<16x16xf32>, vector<16x32xf32>, vector<16x32xf32> -> vector<16x32xf32>
    %130 = vector.broadcast %124 : vector<16x1xf32> to vector<16x32xf32>
    %131 = arith.mulf %129, %130 : vector<16x32xf32>
    %132 = arith.addf %105, %131 : vector<16x32xf32>
    %c16_i32_40 = arith.constant 16 : i32
    %133 = vector.broadcast %c16_i32_40 : i32 to vector<1x32xi32>
    %134 = arith.cmpi sge, %77, %133 : vector<1x32xi32>
    %c24_i32 = arith.constant 24 : i32
    %135 = vector.broadcast %c24_i32 : i32 to vector<1x32xi32>
    %136 = arith.cmpi slt, %77, %135 : vector<1x32xi32>
    %137 = arith.andi %134, %136 : vector<1x32xi1>
    %cst_41 = arith.constant 0.000000e+00 : f32
    %138 = vector.shape_cast %137 : vector<1x32xi1> to vector<1x32xi1>
    %139 = vector.broadcast %138 : vector<1x32xi1> to vector<16x32xi1>
    %140 = vector.broadcast %cst_41 : f32 to vector<16x32xf32>
    %141 = arith.select %139, %68, %140 : vector<16x32xi1>, vector<16x32xf32>
    "tpu.trace_start"() <{level = 10 : i32, message = "qd,kd->qk"}> : () -> ()
    %cst_42 = arith.constant dense<0.000000e+00> : vector<16x16xf32>
    %142 = tpu.matmul %141, %72, %cst_42 {dimension_numbers = #tpu.dot_dimension_numbers<[1], [1], [0], [0], [0, 0, 1, 0], [], []>} : vector<16x32xf32>, vector<16x32xf32>, vector<16x16xf32> -> vector<16x16xf32>
    "tpu.trace_stop"() : () -> ()
    %143 = arith.addf %142, %62 : vector<16x16xf32>
    %cst_43 = arith.constant dense<0xFF800000> : vector<16xf32>
    %144 = vector.multi_reduction <maximumf>, %143, %cst_43 [1] : vector<16x16xf32> to vector<16xf32>
    %145 = vector.shape_cast %144 : vector<16xf32> to vector<16x1xf32>
    %146 = vector.broadcast %145 : vector<16x1xf32> to vector<16x16xf32>
    %147 = arith.subf %143, %146 : vector<16x16xf32>
    %148 = math.exp %147 : vector<16x16xf32>
    %cst_44 = arith.constant dense<0.000000e+00> : vector<16xf32>
    %149 = vector.multi_reduction <add>, %148, %cst_44 [1] : vector<16x16xf32> to vector<16xf32>
    %150 = vector.shape_cast %149 : vector<16xf32> to vector<16x1xf32>
    %151 = tpu.reciprocal %150 {approx = true} : vector<16x1xf32> -> vector<16x1xf32>
    %cst_45 = arith.constant 0.000000e+00 : f32
    %152 = vector.shape_cast %137 : vector<1x32xi1> to vector<1x32xi1>
    %153 = vector.broadcast %152 : vector<1x32xi1> to vector<16x32xi1>
    %154 = vector.broadcast %cst_45 : f32 to vector<16x32xf32>
    %155 = arith.select %153, %76, %154 : vector<16x32xi1>, vector<16x32xf32>
    %cst_46 = arith.constant dense<0.000000e+00> : vector<16x32xf32>
    %156 = tpu.matmul %148, %155, %cst_46 {dimension_numbers = #tpu.dot_dimension_numbers<[1], [0], [0], [1], [0, 0, 1, 1], [], []>} : vector<16x16xf32>, vector<16x32xf32>, vector<16x32xf32> -> vector<16x32xf32>
    %157 = vector.broadcast %151 : vector<16x1xf32> to vector<16x32xf32>
    %158 = arith.mulf %156, %157 : vector<16x32xf32>
    %159 = arith.addf %132, %158 : vector<16x32xf32>
    %c24_i32_47 = arith.constant 24 : i32
    %160 = vector.broadcast %c24_i32_47 : i32 to vector<1x32xi32>
    %161 = arith.cmpi sge, %77, %160 : vector<1x32xi32>
    %c32_i32 = arith.constant 32 : i32
    %162 = vector.broadcast %c32_i32 : i32 to vector<1x32xi32>
    %163 = arith.cmpi slt, %77, %162 : vector<1x32xi32>
    %164 = arith.andi %161, %163 : vector<1x32xi1>
    %cst_48 = arith.constant 0.000000e+00 : f32
    %165 = vector.shape_cast %164 : vector<1x32xi1> to vector<1x32xi1>
    %166 = vector.broadcast %165 : vector<1x32xi1> to vector<16x32xi1>
    %167 = vector.broadcast %cst_48 : f32 to vector<16x32xf32>
    %168 = arith.select %166, %68, %167 : vector<16x32xi1>, vector<16x32xf32>
    "tpu.trace_start"() <{level = 10 : i32, message = "qd,kd->qk"}> : () -> ()
    %cst_49 = arith.constant dense<0.000000e+00> : vector<16x16xf32>
    %169 = tpu.matmul %168, %72, %cst_49 {dimension_numbers = #tpu.dot_dimension_numbers<[1], [1], [0], [0], [0, 0, 1, 0], [], []>} : vector<16x32xf32>, vector<16x32xf32>, vector<16x16xf32> -> vector<16x16xf32>
    "tpu.trace_stop"() : () -> ()
    %170 = arith.addf %169, %62 : vector<16x16xf32>
    %cst_50 = arith.constant dense<0xFF800000> : vector<16xf32>
    %171 = vector.multi_reduction <maximumf>, %170, %cst_50 [1] : vector<16x16xf32> to vector<16xf32>
    %172 = vector.shape_cast %171 : vector<16xf32> to vector<16x1xf32>
    %173 = vector.broadcast %172 : vector<16x1xf32> to vector<16x16xf32>
    %174 = arith.subf %170, %173 : vector<16x16xf32>
    %175 = math.exp %174 : vector<16x16xf32>
    %cst_51 = arith.constant dense<0.000000e+00> : vector<16xf32>
    %176 = vector.multi_reduction <add>, %175, %cst_51 [1] : vector<16x16xf32> to vector<16xf32>
    %177 = vector.shape_cast %176 : vector<16xf32> to vector<16x1xf32>
    %178 = tpu.reciprocal %177 {approx = true} : vector<16x1xf32> -> vector<16x1xf32>
    %cst_52 = arith.constant 0.000000e+00 : f32
    %179 = vector.shape_cast %164 : vector<1x32xi1> to vector<1x32xi1>
    %180 = vector.broadcast %179 : vector<1x32xi1> to vector<16x32xi1>
    %181 = vector.broadcast %cst_52 : f32 to vector<16x32xf32>
    %182 = arith.select %180, %76, %181 : vector<16x32xi1>, vector<16x32xf32>
    %cst_53 = arith.constant dense<0.000000e+00> : vector<16x32xf32>
    %183 = tpu.matmul %175, %182, %cst_53 {dimension_numbers = #tpu.dot_dimension_numbers<[1], [0], [0], [1], [0, 0, 1, 1], [], []>} : vector<16x16xf32>, vector<16x32xf32>, vector<16x32xf32> -> vector<16x32xf32>
    %184 = vector.broadcast %178 : vector<16x1xf32> to vector<16x32xf32>
    %185 = arith.mulf %183, %184 : vector<16x32xf32>
    %186 = arith.addf %159, %185 : vector<16x32xf32>
    %c0_54 = arith.constant 0 : index
    %c0_55 = arith.constant 0 : index
    %187 = vector.load %arg7[%c0_54, %c0_55] : memref<32x128xf32, #tpu.memory_space<vmem>>, vector<32x128xf32>
    %cst_56 = arith.constant dense<0.000000e+00> : vector<16x128xf32>
    %188 = tpu.matmul %186, %187, %cst_56 {dimension_numbers = #tpu.dot_dimension_numbers<[1], [0], [0], [1], [0, 0, 1, 1], [], []>} : vector<16x32xf32>, vector<32x128xf32>, vector<16x128xf32> -> vector<16x128xf32>
    %189 = vector.broadcast %6 : vector<1x128xf32> to vector<16x128xf32>
    %190 = arith.addf %188, %189 : vector<16x128xf32>
    %191 = arith.addf %54, %190 : vector<16x128xf32>
    %cst_57 = arith.constant dense<0.000000e+00> : vector<16xf32>
    %192 = vector.multi_reduction <add>, %191, %cst_57 [1] : vector<16x128xf32> to vector<16xf32>
    %193 = vector.shape_cast %192 : vector<16xf32> to vector<16x1xf32>
    %cst_58 = arith.constant 3.125000e-02 : f32
    %194 = vector.broadcast %cst_58 : f32 to vector<16x1xf32>
    %195 = arith.mulf %193, %194 : vector<16x1xf32>
    %196 = arith.mulf %191, %191 : vector<16x128xf32>
    %cst_59 = arith.constant dense<0.000000e+00> : vector<16xf32>
    %197 = vector.multi_reduction <add>, %196, %cst_59 [1] : vector<16x128xf32> to vector<16xf32>
    %198 = vector.shape_cast %197 : vector<16xf32> to vector<16x1xf32>
    %cst_60 = arith.constant 3.125000e-02 : f32
    %199 = vector.broadcast %cst_60 : f32 to vector<16x1xf32>
    %200 = arith.mulf %198, %199 : vector<16x1xf32>
    %201 = arith.mulf %195, %195 : vector<16x1xf32>
    %202 = arith.subf %200, %201 : vector<16x1xf32>
    %cst_61 = arith.constant 0.000000e+00 : f32
    %203 = vector.broadcast %cst_61 : f32 to vector<16x1xf32>
    %204 = arith.maximumf %202, %203 : vector<16x1xf32>
    %205 = vector.broadcast %195 : vector<16x1xf32> to vector<16x128xf32>
    %206 = arith.subf %191, %205 : vector<16x128xf32>
    %cst_62 = arith.constant 9.99999974E-6 : f32
    %207 = vector.broadcast %cst_62 : f32 to vector<16x1xf32>
    %208 = arith.addf %204, %207 : vector<16x1xf32>
    %209 = math.rsqrt %208 : vector<16x1xf32>
    %210 = vector.broadcast %209 : vector<16x1xf32> to vector<16x128xf32>
    %211 = arith.mulf %206, %210 : vector<16x128xf32>
    %212 = vector.broadcast %7 : vector<1x128xf32> to vector<16x128xf32>
    %213 = arith.mulf %211, %212 : vector<16x128xf32>
    %214 = vector.broadcast %8 : vector<1x128xf32> to vector<16x128xf32>
    %215 = arith.addf %213, %214 : vector<16x128xf32>
    %216 = vector.extract_strided_slice %215 {offsets = [0, 0], sizes = [16, 32], strides = [1, 1]} : vector<16x128xf32> to vector<16x32xf32>
    %c0_63 = arith.constant 0 : index
    %c0_64 = arith.constant 0 : index
    %217 = vector.load %arg8[%c0_63, %c0_64] : memref<32x128xf32, #tpu.memory_space<vmem>>, vector<32x128xf32>
    %cst_65 = arith.constant dense<0.000000e+00> : vector<16x128xf32>
    %218 = tpu.matmul %216, %217, %cst_65 {dimension_numbers = #tpu.dot_dimension_numbers<[1], [0], [0], [1], [0, 0, 1, 1], [], []>} : vector<16x32xf32>, vector<32x128xf32>, vector<16x128xf32> -> vector<16x128xf32>
    %219 = vector.broadcast %9 : vector<1x128xf32> to vector<16x128xf32>
    %220 = arith.addf %218, %219 : vector<16x128xf32>
    %cst_66 = arith.constant 0.000000e+00 : f32
    %221 = vector.broadcast %cst_66 : f32 to vector<16x128xf32>
    %222 = arith.maximumf %220, %221 : vector<16x128xf32>
    %c0_67 = arith.constant 0 : index
    %c0_68 = arith.constant 0 : index
    %223 = vector.load %arg9[%c0_67, %c0_68] : memref<128x128xf32, #tpu.memory_space<vmem>>, vector<128x128xf32>
    %cst_69 = arith.constant dense<0.000000e+00> : vector<16x128xf32>
    %224 = tpu.matmul %222, %223, %cst_69 {dimension_numbers = #tpu.dot_dimension_numbers<[1], [0], [0], [1], [0, 0, 1, 1], [], []>} : vector<16x128xf32>, vector<128x128xf32>, vector<16x128xf32> -> vector<16x128xf32>
    %225 = vector.broadcast %10 : vector<1x128xf32> to vector<16x128xf32>
    %226 = arith.addf %224, %225 : vector<16x128xf32>
    %227 = arith.addf %215, %226 : vector<16x128xf32>
    %cst_70 = arith.constant dense<0.000000e+00> : vector<16xf32>
    %228 = vector.multi_reduction <add>, %227, %cst_70 [1] : vector<16x128xf32> to vector<16xf32>
    %229 = vector.shape_cast %228 : vector<16xf32> to vector<16x1xf32>
    %cst_71 = arith.constant 3.125000e-02 : f32
    %230 = vector.broadcast %cst_71 : f32 to vector<16x1xf32>
    %231 = arith.mulf %229, %230 : vector<16x1xf32>
    %232 = arith.mulf %227, %227 : vector<16x128xf32>
    %cst_72 = arith.constant dense<0.000000e+00> : vector<16xf32>
    %233 = vector.multi_reduction <add>, %232, %cst_72 [1] : vector<16x128xf32> to vector<16xf32>
    %234 = vector.shape_cast %233 : vector<16xf32> to vector<16x1xf32>
    %cst_73 = arith.constant 3.125000e-02 : f32
    %235 = vector.broadcast %cst_73 : f32 to vector<16x1xf32>
    %236 = arith.mulf %234, %235 : vector<16x1xf32>
    %237 = arith.mulf %231, %231 : vector<16x1xf32>
    %238 = arith.subf %236, %237 : vector<16x1xf32>
    %cst_74 = arith.constant 0.000000e+00 : f32
    %239 = vector.broadcast %cst_74 : f32 to vector<16x1xf32>
    %240 = arith.maximumf %238, %239 : vector<16x1xf32>
    %241 = vector.broadcast %231 : vector<16x1xf32> to vector<16x128xf32>
    %242 = arith.subf %227, %241 : vector<16x128xf32>
    %cst_75 = arith.constant 9.99999974E-6 : f32
    %243 = vector.broadcast %cst_75 : f32 to vector<16x1xf32>
    %244 = arith.addf %240, %243 : vector<16x1xf32>
    %245 = math.rsqrt %244 : vector<16x1xf32>
    %246 = vector.broadcast %245 : vector<16x1xf32> to vector<16x128xf32>
    %247 = arith.mulf %242, %246 : vector<16x128xf32>
    %248 = vector.broadcast %11 : vector<1x128xf32> to vector<16x128xf32>
    %249 = arith.mulf %247, %248 : vector<16x128xf32>
    %250 = vector.broadcast %12 : vector<1x128xf32> to vector<16x128xf32>
    %251 = arith.addf %249, %250 : vector<16x128xf32>
    %c0_76 = arith.constant 0 : index
    %c0_77 = arith.constant 0 : index
    %252 = vector.load %arg11[%c0_76, %c0_77] : memref<16x128xf32, #tpu.memory_space<vmem>>, vector<16x128xf32>
    tpu.vector_store %arg11[%c0_76, %c0_77], %251 {strides = array<i32>} : memref<16x128xf32, #tpu.memory_space<vmem>>, vector<16x128xf32>,
    return
  }
}

</mosaic_0001>

<llo_original>
// kernel: squeeze.1
$region0: #{squeeze.1}
  %s0 = inlined_call_operand.vmem [shape: s32[2,8], index: 0, kind: input, shape index: {}]
  %s1 = inlined_call_operand.vmem [shape: s32[16,1], index: 1, kind: output, shape index: {}]
  $region1: #{squeeze.1} parent=0
    #allocation0 [shape = 'u8[4096]{0}', space=vmem, size = 0x1000, scoped, tag = 'scoped mem for input reshape']
    %s3 = ssub.s32 4, 1
    %v4 = vld [vmem:[%s0] sm:%s3]
    %5 = vst [vmem:[#allocation0] sm:%s3] %v4
    %v6 = vld [vmem:[#allocation0] sm:$0x3]
    %vm7 = vcmask 7168
    %8 = vst.msk [vmem:[%s1] ss:$8 sm:$0x3] %vm7, %v6
    %v9 = vld [vmem:[#allocation0] sm:$0x3]
    %10 = vrot.lane.b32.xlu0 %v9, 127
    %v11 = vpop.permute.xlu0 %10
    %vm12 = vcmask 7168
    %s13 = scalar_lea.vmem %s1, 1
    %14 = vst.msk [vmem:[%s13] ss:$8 sm:$0x3] %vm12, %v11
    %v15 = vld [vmem:[#allocation0] sm:$0x3]
    %16 = vrot.lane.b32.xlu0 %v15, 126
    %v17 = vpop.permute.xlu0 %16
    %vm18 = vcmask 7168
    %s19 = scalar_lea.vmem %s1, 2
    %20 = vst.msk [vmem:[%s19] ss:$8 sm:$0x3] %vm18, %v17
    %v21 = vld [vmem:[#allocation0] sm:$0x3]
    %22 = vrot.lane.b32.xlu0 %v21, 125
    %v23 = vpop.permute.xlu0 %22
    %vm24 = vcmask 7168
    %s25 = scalar_lea.vmem %s1, 3
    %26 = vst.msk [vmem:[%s25] ss:$8 sm:$0x3] %vm24, %v23
    %v27 = vld [vmem:[#allocation0] sm:$0x3]
    %28 = vrot.lane.b32.xlu0 %v27, 124
    %v29 = vpop.permute.xlu0 %28
    %vm30 = vcmask 7168
    %s31 = scalar_lea.vmem %s1, 4
    %32 = vst.msk [vmem:[%s31] ss:$8 sm:$0x3] %vm30, %v29
    %v33 = vld [vmem:[#allocation0] sm:$0x3]
    %34 = vrot.lane.b32.xlu0 %v33, 123
    %v35 = vpop.permute.xlu0 %34
    %vm36 = vcmask 7168
    %s37 = scalar_lea.vmem %s1, 5
    %38 = vst.msk [vmem:[%s37] ss:$8 sm:$0x3] %vm36, %v35
    %v39 = vld [vmem:[#allocation0] sm:$0x3]
    %40 = vrot.lane.b32.xlu0 %v39, 122
    %v41 = vpop.permute.xlu0 %40
    %vm42 = vcmask 7168
    %s43 = scalar_lea.vmem %s1, 6
    %44 = vst.msk [vmem:[%s43] ss:$8 sm:$0x3] %vm42, %v41
    %v45 = vld [vmem:[#allocation0] sm:$0x3]
    %46 = vrot.lane.b32.xlu0 %v45, 121
    %v47 = vpop.permute.xlu0 %46
    %vm48 = vcmask 7168
    %s49 = scalar_lea.vmem %s1, 7
    %50 = vst.msk [vmem:[%s49] ss:$8 sm:$0x3] %vm48, %v47

// kernel: _lambda_.1
$region0: #{_lambda_.1}
  #allocation0 [shape = 'u32[]', space=smem, size = 0x4, offset = 0x4, fixed_abs, tag = 'smem constant byte address 0x4 - core index']
  #allocation1 [shape = 'u32[72,128]{1,0:T(1,128)}', space=vmem, size = 0x9000, scoped, tag = 'internal scratch']
  %s0 = inlined_call_operand.vmem [shape: s32[16,1], index: 0, kind: input, shape index: {}]
  %s1 = inlined_call_operand.vmem [shape: s32[16,1], index: 1, kind: input, shape index: {}]
  %s2 = inlined_call_operand.vmem [shape: s32[16,1], index: 2, kind: input, shape index: {}]
  %s3 = inlined_call_operand.vmem [shape: s32[1,16], index: 3, kind: input, shape index: {}]
  %s4 = inlined_call_operand.vmem [shape: f32[16,128], index: 4, kind: input, shape index: {}]
  %s5 = inlined_call_operand.hbm [shape: f32[24,128], index: 5, kind: input, shape index: {}]
  %s6 = inlined_call_operand.hbm [shape: f32[96,32], index: 6, kind: input, shape index: {}]
  %s7 = inlined_call_operand.vmem [shape: f32[32,128], index: 7, kind: input, shape index: {}]
  %s8 = inlined_call_operand.vmem [shape: f32[32,128], index: 8, kind: input, shape index: {}]
  %s9 = inlined_call_operand.hbm [shape: f32[128,128], index: 9, kind: input, shape index: {}]
  %s10 = inlined_call_operand.vmem [shape: f32[12,128], index: 10, kind: input, shape index: {}]
  %s11 = inlined_call_operand.vmem [shape: f32[16,128], index: 11, kind: output, shape index: {}]
  %s12 = sld [smem:[#allocation0]]
  $region66: #{_lambda_.1} parent=0
    _
  %s14 = ssub.s32 1, %s12
  %s15 = scalar_select 0, %s14, %s12
  $region1: #{_lambda_.1} parent=0
    #allocation2 [shape = 'u8[12288]{0}', space=vmem, size = 0x3000, scoped, tag = 'input window, operand 5, single buffered']
    #allocation3 [shape = 's32[1]{0}', space=sflag, size = 0x4, scoped, tag = 'scoped memory for _lambda_.1']
    #allocation4 [shape = 'u8[49152]{0}', space=vmem, size = 0xc000, scoped, tag = 'input window, operand 6, single buffered']
    #allocation5 [shape = 's32[1]{0}', space=sflag, size = 0x4, scoped, tag = 'scoped memory for _lambda_.1']
    #allocation6 [shape = 'u8[65536]{0}', space=vmem, size = 0x10000, scoped, tag = 'input window, operand 9, single buffered']
    %16 = vsyncpa [#allocation3], 0
    %17 = vsyncpa [#allocation5], 0
    // Predicated region
    $region2: #{_lambda_.1} parent=1 // pred_check
      _
    $region3: #{_lambda_.1} parent=1 // pred_check_branch
      %19 = sbr.rel (0) target = $region5
    $region4: #{_lambda_.1} parent=1 // pred_region
      _
    $region5: #{_lambda_.1} parent=1 // pred_fallthru
      _
    // Predicated region
    $region6: #{_lambda_.1} parent=1 // pred_check
      _
    $region7: #{_lambda_.1} parent=1 // pred_check_branch
      %21 = sbr.rel (0) target = $region9
    $region8: #{_lambda_.1} parent=1 // pred_region
      _
    $region9: #{_lambda_.1} parent=1 // pred_fallthru
      _
    // Predicated region
    $region10: #{_lambda_.1} parent=1 // pred_check
      _
    $region11: #{_lambda_.1} parent=1 // pred_check_branch
      %23 = sbr.rel (0) target = $region13
    $region12: #{_lambda_.1} parent=1 // pred_region
      _
    $region13: #{_lambda_.1} parent=1 // pred_fallthru
      _
    // Predicated region
    $region14: #{_lambda_.1} parent=1 // pred_check
      _
    $region15: #{_lambda_.1} parent=1 // pred_check_branch
      %25 = sbr.rel (0) target = $region17
    $region16: #{_lambda_.1} parent=1 // pred_region
      _
    $region17: #{_lambda_.1} parent=1 // pred_fallthru
      _
    // Predicated region
    $region18: #{_lambda_.1} parent=1 // pred_check
      _
    $region19: #{_lambda_.1} parent=1 // pred_check_branch
      %27 = sbr.rel (0) target = $region21
    $region20: #{_lambda_.1} parent=1 // pred_region
      _
    $region21: #{_lambda_.1} parent=1 // pred_fallthru
      _
    // Predicated region
    $region22: #{_lambda_.1} parent=1 // pred_check
      _
    $region23: #{_lambda_.1} parent=1 // pred_check_branch
      %29 = sbr.rel (0) target = $region25
    $region24: #{_lambda_.1} parent=1 // pred_region
      %31 = vsyncadd [#allocation3], 0
      %s32 = sshll.u32 %s5, 4
      %s33 = int_to_ptr.hbm [resolvable:$true] %s32
      %s34 = sshll.u32 [#allocation2], 4
      %s35 = int_to_ptr.vmem [resolvable:$true] %s34
      %40 = dma.hbm_to_vmem [thread:$0]  %s33, 384, %s35, [#allocation3], 128, 128, 8
    $region25: #{_lambda_.1} parent=1 // pred_fallthru
      _
    // Predicated region
    $region26: #{_lambda_.1} parent=1 // pred_check
      _
    $region27: #{_lambda_.1} parent=1 // pred_check_branch
      %42 = sbr.rel (0) target = $region29
    $region28: #{_lambda_.1} parent=1 // pred_region
      %44 = vsyncadd [#allocation5], 0
      %s45 = sshll.u32 %s6, 4
      %s46 = int_to_ptr.hbm [resolvable:$true] %s45
      %s47 = sshll.u32 [#allocation4], 4
      %s48 = int_to_ptr.vmem [resolvable:$true] %s47
      %53 = dma.hbm_to_vmem [thread:$0]  %s46, 1536, %s48, [#allocation5], 128, 128, 8
    $region29: #{_lambda_.1} parent=1 // pred_fallthru
      _
    // Predicated region
    $region30: #{_lambda_.1} parent=1 // pred_check
      _
    $region31: #{_lambda_.1} parent=1 // pred_check_branch
      %55 = sbr.rel (0) target = $region33
    $region32: #{_lambda_.1} parent=1 // pred_region
      _
    $region33: #{_lambda_.1} parent=1 // pred_fallthru
      _
    // Predicated region
    $region34: #{_lambda_.1} parent=1 // pred_check
      _
    $region35: #{_lambda_.1} parent=1 // pred_check_branch
      %57 = sbr.rel (0) target = $region37
    $region36: #{_lambda_.1} parent=1 // pred_region
      _
    $region37: #{_lambda_.1} parent=1 // pred_fallthru
      _
    // Predicated region
    $region38: #{_lambda_.1} parent=1 // pred_check
      _
    $region39: #{_lambda_.1} parent=1 // pred_check_branch
      %59 = sbr.rel (0) target = $region41
    $region40: #{_lambda_.1} parent=1 // pred_region
      %61 = vsyncadd [#allocation5], 0
      %s62 = sshll.u32 %s9, 4
      %s63 = int_to_ptr.hbm [resolvable:$true] %s62
      %s64 = sshll.u32 [#allocation6], 4
      %s65 = int_to_ptr.vmem [resolvable:$true] %s64
      %70 = dma.hbm_to_vmem [thread:$0]  %s63, 2048, %s65, [#allocation5], 128, 128, 8
    $region41: #{_lambda_.1} parent=1 // pred_fallthru
      _
    // Predicated region
    $region42: #{_lambda_.1} parent=1 // pred_check
      _
    $region43: #{_lambda_.1} parent=1 // pred_check_branch
      %72 = sbr.rel (0) target = $region45
    $region44: #{_lambda_.1} parent=1 // pred_region
      _
    $region45: #{_lambda_.1} parent=1 // pred_fallthru
      _
    // Predicated region
    $region46: #{_lambda_.1} parent=1 // pred_check
      _
    $region47: #{_lambda_.1} parent=1 // pred_check_branch
      %74 = sbr.rel (0) target = $region49
    $region48: #{_lambda_.1} parent=1 // pred_region
      %76 = dma.done [#allocation3], 384
    $region49: #{_lambda_.1} parent=1 // pred_fallthru
      _
    // Predicated region
    $region50: #{_lambda_.1} parent=1 // pred_check
      _
    $region51: #{_lambda_.1} parent=1 // pred_check_branch
      %78 = sbr.rel (0) target = $region53
    $region52: #{_lambda_.1} parent=1 // pred_region
      %80 = dma.done [#allocation5], 1536
    $region53: #{_lambda_.1} parent=1 // pred_fallthru
      _
    // Predicated region
    $region54: #{_lambda_.1} parent=1 // pred_check
      _
    $region55: #{_lambda_.1} parent=1 // pred_check_branch
      %82 = sbr.rel (0) target = $region57
    $region56: #{_lambda_.1} parent=1 // pred_region
      %84 = dma.done [#allocation5], 2048
    $region57: #{_lambda_.1} parent=1 // pred_fallthru
      _
    %v85 = vld [vmem:[%s10] sm:$0xff]
    %v86 = vld [vmem:[%s10 + $0x8] sm:$0xf]
    %v87 = vlaneseq
    %v88 = vand.u32 %v87, 127
    %v89 = vld [vmem:[%s0] sm:$0xff]
    %v90 = vld [vmem:[%s0 + $0x8] sm:$0xff]
    %91 = vset.pattern.permute.xlu0 0
    %92 = vperm.xlu0 %91, %v89
    %v93 = vpop.permute.xlu0 %92
    %94 = vset.pattern.permute.xlu0 0
    %95 = vperm.xlu0 %94, %v90
    %v96 = vpop.permute.xlu0 %95
    %vm97 = vcmp.eq.s32.totalorder %v93, %v88
    %vm98 = vcmp.eq.s32.totalorder %v96, %v88
    %v99 = vsel %vm97, 1, 0
    %v100 = vsel %vm98, 1, 0
    %v101 = vcvt.s32.f32 %v99
    %v102 = vcvt.s32.f32 %v100
    %v103 = vld [vmem:[%s1] sm:$0xff]
    %v104 = vld [vmem:[%s1 + $0x8] sm:$0xff]
    %v105 = vadd.s32 %v103, 10
    %v106 = vadd.s32 %v104, 10
    %107 = vset.pattern.permute.xlu0 0
    %108 = vperm.xlu0 %107, %v105
    %v109 = vpop.permute.xlu0 %108
    %110 = vset.pattern.permute.xlu0 0
    %111 = vperm.xlu0 %110, %v106
    %v112 = vpop.permute.xlu0 %111
    %vm113 = vcmp.eq.s32.totalorder %v109, %v88
    %vm114 = vcmp.eq.s32.totalorder %v112, %v88
    %v115 = vsel %vm113, 1, 0
    %v116 = vsel %vm114, 1, 0
    %v117 = vcvt.s32.f32 %v115
    %v118 = vcvt.s32.f32 %v116
    %v119 = vadd.f32 %v101, %v117
    %v120 = vadd.f32 %v102, %v118
    %v121 = vld [vmem:[%s4] sm:$0xff]
    %v122 = vld [vmem:[%s4 + $0x8] sm:$0xff]
    %v123 = vld [vmem:[#allocation2] sm:$0xff]
    %v124 = vld [vmem:[#allocation2 + $0x8] sm:$0xff]
    %v125 = vld [vmem:[#allocation2 + $0x10] sm:$0xff]
    %vm126 = vcmask 195584
    %v128 = vsel %vm126, %v119, 0
    %v131 = vsel %vm126, %v120, 0
    %133 = vmatpush.msra.mxu0 0.0
    %134 = vmatpush.msra.mxu0 0.0
    %135 = vmatpush.msra.mxu0 0.0
    %136 = vmatpush.msra.mxu0 0.0
    %137 = vmatpush.msra.mxu0 0.0
    %138 = vmatpush.msra.mxu0 0.0
    %139 = vmatpush.msra.mxu0 0.0
    %140 = vmatpush.msra.mxu0 0.0
    %141 = vmatpush.msra.mxu0 0.0
    %142 = vmatpush.msra.mxu0 0.0
    %143 = vmatpush.msra.mxu0 0.0
    %144 = vmatpush.msra.mxu0 0.0
    %145 = vmatpush.msra.mxu0 0.0
    %146 = vmatpush.msra.mxu0 %v125
    %147 = vmatpush.msra.mxu0 %v124
    %148 = vmatpush.msra.mxu0 %v123
    %149 = vmatmul.f32.gmra.mxu0 %v128
    %v150 = vpop.f32.mrf.mxu0
    %v151 = vadd.f32 0.0, %v150
    %152 = vmatmul.f32.gmra.mxu0 %v131
    %v153 = vpop.f32.mrf.mxu0
    %v154 = vadd.f32 0.0, %v153
    %155 = vdwg.mxu0
    %v156 = vadd.f32 %v121, %v151
    %v157 = vadd.f32 %v122, %v154
    %158 = vadd.xlane.f32.xlu0 %v156
    %v159 = vpop.xlane.xlu0 %158
    %160 = vadd.xlane.f32.xlu0 %v157
    %v161 = vpop.xlane.xlu0 %160
    %v162 = vmul.f32 %v159, 0.03125
    %v163 = vmul.f32 %v161, 0.03125
    %v164 = vmul.f32 %v156, %v156
    %v165 = vmul.f32 %v157, %v157
    %166 = vadd.xlane.f32.xlu0 %v164
    %v167 = vpop.xlane.xlu0 %166
    %168 = vadd.xlane.f32.xlu0 %v165
    %v169 = vpop.xlane.xlu0 %168
    %v170 = vmul.f32 %v167, 0.03125
    %v171 = vmul.f32 %v169, 0.03125
    %v172 = vmul.f32 %v162, %v162
    %v173 = vmul.f32 %v163, %v163
    %v174 = vsub.f32 %v170, %v172
    %v175 = vsub.f32 %v171, %v173
    %v176 = vmax.f32 %v174, 0.0
    %v177 = vmax.f32 %v175, 0.0
    %v178 = vsub.f32 %v156, %v162
    %v179 = vsub.f32 %v157, %v163
    %v180 = vadd.f32 %v176, 1e-05
    %v181 = vadd.f32 %v177, 1e-05
    %v182 = vrsqrt.pop %v180
    %v183 = vmul.f32 %v182, %v180
    %v184 = vmul.f32 %v183, %v182
    %v185 = vmul.f32 0.5, %v184
    %v186 = vsub.f32 1.5, %v185
    %v187 = vmul.f32 %v182, %v186
    %vm188 = vweird.f32 %v180
    %vm189 = vweird.f32 %v182
    %vm190 = vmor %vm188, %vm189
    %v191 = vsel %vm190, %v182, %v187
    %v192 = vrsqrt.pop %v181
    %v193 = vmul.f32 %v192, %v181
    %v194 = vmul.f32 %v193, %v192
    %v195 = vmul.f32 0.5, %v194
    %v196 = vsub.f32 1.5, %v195
    %v197 = vmul.f32 %v192, %v196
    %vm198 = vweird.f32 %v181
    %vm199 = vweird.f32 %v192
    %vm200 = vmor %vm198, %vm199
    %v201 = vsel %vm200, %v192, %v197
    %v202 = vmul.f32 %v178, %v191
    %v203 = vmul.f32 %v179, %v201
    %v204 = vperm.slane %v85, 0
    %v205 = vmul.f32 %v202, %v204
    %v206 = vmul.f32 %v203, %v204
    %v207 = vperm.slane %v85, 1
    %v208 = vadd.f32 %v205, %v207
    %v209 = vadd.f32 %v206, %v207
    %v210 = vld [vmem:[%s2] sm:$0xff]
    %v211 = vld [vmem:[%s2 + $0x8] sm:$0xff]
    %v212 = vld [vmem:[%s3] sm:$0x1]
    %213 = vset.pattern.permute.xlu0 0
    %214 = vperm.xlu0 %213, %v210
    %v215 = vpop.permute.xlu0 %214
    %216 = vset.pattern.permute.xlu0 0
    %217 = vperm.xlu0 %216, %v211
    %v218 = vpop.permute.xlu0 %217
    %v219 = vperm.slane %v212, 0
    %vm220 = vcmp.eq.s32.totalorder %v215, %v219
    %vm221 = vcmp.eq.s32.totalorder %v218, %v219
    %v222 = vsel %vm220, 0.0, -1e+09
    %v223 = vsel %vm221, 0.0, -1e+09
    %v224 = vld [vmem:[#allocation4] sm:$0xff]
    %v225 = vld [vmem:[#allocation4 + $0x8] sm:$0xff]
    %v226 = vld [vmem:[#allocation4 + $0x10] sm:$0xff]
    %v227 = vld [vmem:[#allocation4 + $0x18] sm:$0xff]
    %v228 = vld [vmem:[#allocation4 + $0x20] sm:$0xff]
    %v229 = vld [vmem:[#allocation4 + $0x28] sm:$0xff]
    %v230 = vld [vmem:[#allocation4 + $0x30] sm:$0xff]
    %v231 = vld [vmem:[#allocation4 + $0x38] sm:$0xff]
    %v232 = vld [vmem:[#allocation4 + $0x40] sm:$0xff]
    %v233 = vld [vmem:[#allocation4 + $0x48] sm:$0xff]
    %v234 = vld [vmem:[#allocation4 + $0x50] sm:$0xff]
    %v235 = vld [vmem:[#allocation4 + $0x58] sm:$0xff]
    %v236 = vperm.slane %v85, 2
    %vm237 = vcmask 261120
    %v239 = vsel %vm237, %v208, 0
    %v242 = vsel %vm237, %v209, 0
    %244 = vmatpush.msra.mxu0 0.0
    %245 = vmatpush.msra.mxu0 0.0
    %246 = vmatpush.msra.mxu0 0.0
    %247 = vmatpush.msra.mxu0 0.0
    %248 = vmatpush.msra.mxu0 0.0
    %249 = vmatpush.msra.mxu0 0.0
    %250 = vmatpush.msra.mxu0 0.0
    %251 = vmatpush.msra.mxu0 0.0
    %252 = vmatpush.msra.mxu0 0.0
    %253 = vmatpush.msra.mxu0 0.0
    %254 = vmatpush.msra.mxu0 0.0
    %255 = vmatpush.msra.mxu0 0.0
    %256 = vmatpush.msra.mxu0 %v227
    %257 = vmatpush.msra.mxu0 %v226
    %258 = vmatpush.msra.mxu0 %v225
    %259 = vmatpush.msra.mxu0 %v224
    %260 = vmatmul.f32.gmra.mxu0 %v239
    %v261 = vpop.f32.mrf.mxu0
    %v262 = vadd.f32 %v236, %v261
    %263 = vmatmul.f32.gmra.mxu0 %v242
    %v264 = vpop.f32.mrf.mxu0
    %v265 = vadd.f32 %v236, %v264
    %266 = vdwg.mxu0
    %v267 = vperm.slane %v85, 3
    %268 = vmatpush.msra.mxu0 0.0
    %269 = vmatpush.msra.mxu0 0.0
    %270 = vmatpush.msra.mxu0 0.0
    %271 = vmatpush.msra.mxu0 0.0
    %272 = vmatpush.msra.mxu0 0.0
    %273 = vmatpush.msra.mxu0 0.0
    %274 = vmatpush.msra.mxu0 0.0
    %275 = vmatpush.msra.mxu0 0.0
    %276 = vmatpush.msra.mxu0 0.0
    %277 = vmatpush.msra.mxu0 0.0
    %278 = vmatpush.msra.mxu0 0.0
    %279 = vmatpush.msra.mxu0 0.0
    %280 = vmatpush.msra.mxu0 %v231
    %281 = vmatpush.msra.mxu0 %v230
    %282 = vmatpush.msra.mxu0 %v229
    %283 = vmatpush.msra.mxu0 %v228
    %284 = vmatmul.f32.gmra.mxu0 %v239
    %v285 = vpop.f32.mrf.mxu0
    %v286 = vadd.f32 %v267, %v285
    %287 = vmatmul.f32.gmra.mxu0 %v242
    %v288 = vpop.f32.mrf.mxu0
    %v289 = vadd.f32 %v267, %v288
    %290 = vdwg.mxu0
    %v291 = vperm.slane %v85, 4
    %292 = vmatpush.msra.mxu0 0.0
    %293 = vmatpush.msra.mxu0 0.0
    %294 = vmatpush.msra.mxu0 0.0
    %295 = vmatpush.msra.mxu0 0.0
    %296 = vmatpush.msra.mxu0 0.0
    %297 = vmatpush.msra.mxu0 0.0
    %298 = vmatpush.msra.mxu0 0.0
    %299 = vmatpush.msra.mxu0 0.0
    %300 = vmatpush.msra.mxu0 0.0
    %301 = vmatpush.msra.mxu0 0.0
    %302 = vmatpush.msra.mxu0 0.0
    %303 = vmatpush.msra.mxu0 0.0
    %304 = vmatpush.msra.mxu0 %v235
    %305 = vmatpush.msra.mxu0 %v234
    %306 = vmatpush.msra.mxu0 %v233
    %307 = vmatpush.msra.mxu0 %v232
    %308 = vmatmul.f32.gmra.mxu0 %v239
    %v309 = vpop.f32.mrf.mxu0
    %v310 = vadd.f32 %v291, %v309
    %311 = vmatmul.f32.gmra.mxu0 %v242
    %v312 = vpop.f32.mrf.mxu0
    %v313 = vadd.f32 %v291, %v312
    %314 = vdwg.mxu0
    %vm315 = vcmp.ge.s32.totalorder %v88, 0
    %vm316 = vcmp.lt.s32.totalorder %v88, 8
    %vm317 = vmand %vm315, %vm316
    %v318 = vsel %vm317, 1, 0
    %vm319 = vcmp.eq.s32.totalorder %v318, 1
    %v320 = vsel %vm319, %v262, 0.0
    %v321 = vsel %vm319, %v265, 0.0
    %v323 = vsel %vm237, %v320, 0
    %v326 = vsel %vm237, %v321, 0
    %v329 = vsel %vm237, %v286, 0
    %v332 = vsel %vm237, %v289, 0
    %334 = vmatpush.xpose.msra.mxu0 0.0
    %335 = vmatpush.xpose.msra.mxu0 0.0
    %336 = vmatpush.xpose.msra.mxu0 0.0
    %337 = vmatpush.xpose.msra.mxu0 0.0
    %338 = vmatpush.xpose.msra.mxu0 0.0
    %339 = vmatpush.xpose.msra.mxu0 0.0
    %340 = vmatpush.xpose.msra.mxu0 0.0
    %341 = vmatpush.xpose.msra.mxu0 0.0
    %342 = vmatpush.xpose.msra.mxu0 0.0
    %343 = vmatpush.xpose.msra.mxu0 0.0
    %344 = vmatpush.xpose.msra.mxu0 0.0
    %345 = vmatpush.xpose.msra.mxu0 0.0
    %346 = vmatpush.xpose.msra.mxu0 0.0
    %347 = vmatpush.xpose.msra.mxu0 0.0
    %348 = vmatpush.xpose.msra.mxu0 %v332
    %349 = vmatpush.xpose.msra.mxu0 %v329
    %350 = vmatmul.f32.gmra.mxu0 %v323
    %v351 = vpop.f32.mrf.mxu0
    %v352 = vadd.f32 %v222, %v351
    %353 = vmatmul.f32.gmra.mxu0 %v326
    %v354 = vpop.f32.mrf.mxu0
    %v355 = vadd.f32 %v223, %v354
    %356 = vdwg.mxu0
    %vm357 = vcmask 130048
    %v358 = vsel %vm357, %v352, -inf
    %359 = vmax.xlane.f32.xlu0 %v358
    %v360 = vpop.xlane.xlu0 %359
    %v361 = vsel %vm357, %v355, -inf
    %362 = vmax.xlane.f32.xlu0 %v361
    %v363 = vpop.xlane.xlu0 %362
    %v364 = vsub.f32 %v352, %v360
    %v365 = vsub.f32 %v355, %v363
    %v366 = vmul.f32 %v364, 1.442695
    %v367 = vpow.pop %v366
    %v368 = vmul.f32 %v365, 1.442695
    %v369 = vpow.pop %v368
    %v370 = vsel %vm357, %v367, 0.0
    %371 = vadd.xlane.f32.xlu0 %v370
    %v372 = vpop.xlane.xlu0 %371
    %v373 = vsel %vm357, %v369, 0.0
    %374 = vadd.xlane.f32.xlu0 %v373
    %v375 = vpop.xlane.xlu0 %374
    %v376 = vrcp.pop %v372
    %v377 = vrcp.pop %v375
    %v378 = vsel %vm319, %v310, 0.0
    %v379 = vsel %vm319, %v313, 0.0
    %v381 = vsel %vm357, %v367, 0
    %v384 = vsel %vm357, %v369, 0
    %386 = vmatpush.msra.mxu0 0.0
    %387 = vmatpush.msra.mxu0 0.0
    %388 = vmatpush.msra.mxu0 0.0
    %389 = vmatpush.msra.mxu0 0.0
    %390 = vmatpush.msra.mxu0 0.0
    %391 = vmatpush.msra.mxu0 0.0
    %392 = vmatpush.msra.mxu0 0.0
    %393 = vmatpush.msra.mxu0 0.0
    %394 = vmatpush.msra.mxu0 0.0
    %395 = vmatpush.msra.mxu0 0.0
    %396 = vmatpush.msra.mxu0 0.0
    %397 = vmatpush.msra.mxu0 0.0
    %398 = vmatpush.msra.mxu0 0.0
    %399 = vmatpush.msra.mxu0 0.0
    %400 = vmatpush.msra.mxu0 %v379
    %401 = vmatpush.msra.mxu0 %v378
    %402 = vmatmul.f32.gmra.mxu0 %v381
    %v403 = vpop.f32.mrf.mxu0
    %v404 = vadd.f32 0.0, %v403
    %405 = vmatmul.f32.gmra.mxu0 %v384
    %v406 = vpop.f32.mrf.mxu0
    %v407 = vadd.f32 0.0, %v406
    %408 = vdwg.mxu0
    %v409 = vmul.f32 %v404, %v376
    %v410 = vmul.f32 %v407, %v377
    %v411 = vadd.f32 %v409, 0.0
    %v412 = vadd.f32 %v410, 0.0
    %vm413 = vcmp.ge.s32.totalorder %v88, 8
    %vm414 = vcmp.lt.s32.totalorder %v88, 16
    %vm415 = vmand %vm413, %vm414
    %v416 = vsel %vm415, 1, 0
    %vm417 = vcmp.eq.s32.totalorder %v416, 1
    %v418 = vsel %vm417, %v262, 0.0
    %v419 = vsel %vm417, %v265, 0.0
    %v421 = vsel %vm237, %v418, 0
    %v424 = vsel %vm237, %v419, 0
    %426 = vmatpush.xpose.msra.mxu0 0.0
    %427 = vmatpush.xpose.msra.mxu0 0.0
    %428 = vmatpush.xpose.msra.mxu0 0.0
    %429 = vmatpush.xpose.msra.mxu0 0.0
    %430 = vmatpush.xpose.msra.mxu0 0.0
    %431 = vmatpush.xpose.msra.mxu0 0.0
    %432 = vmatpush.xpose.msra.mxu0 0.0
    %433 = vmatpush.xpose.msra.mxu0 0.0
    %434 = vmatpush.xpose.msra.mxu0 0.0
    %435 = vmatpush.xpose.msra.mxu0 0.0
    %436 = vmatpush.xpose.msra.mxu0 0.0
    %437 = vmatpush.xpose.msra.mxu0 0.0
    %438 = vmatpush.xpose.msra.mxu0 0.0
    %439 = vmatpush.xpose.msra.mxu0 0.0
    %440 = vmatpush.xpose.msra.mxu0 %v332
    %441 = vmatpush.xpose.msra.mxu0 %v329
    %442 = vmatmul.f32.gmra.mxu0 %v421
    %v443 = vpop.f32.mrf.mxu0
    %v444 = vadd.f32 %v222, %v443
    %445 = vmatmul.f32.gmra.mxu0 %v424
    %v446 = vpop.f32.mrf.mxu0
    %v447 = vadd.f32 %v223, %v446
    %448 = vdwg.mxu0
    %v449 = vsel %vm357, %v444, -inf
    %450 = vmax.xlane.f32.xlu0 %v449
    %v451 = vpop.xlane.xlu0 %450
    %v452 = vsel %vm357, %v447, -inf
    %453 = vmax.xlane.f32.xlu0 %v452
    %v454 = vpop.xlane.xlu0 %453
    %v455 = vsub.f32 %v444, %v451
    %v456 = vsub.f32 %v447, %v454
    %v457 = vmul.f32 %v455, 1.442695
    %v458 = vpow.pop %v457
    %v459 = vmul.f32 %v456, 1.442695
    %v460 = vpow.pop %v459
    %v461 = vsel %vm357, %v458, 0.0
    %462 = vadd.xlane.f32.xlu0 %v461
    %v463 = vpop.xlane.xlu0 %462
    %v464 = vsel %vm357, %v460, 0.0
    %465 = vadd.xlane.f32.xlu0 %v464
    %v466 = vpop.xlane.xlu0 %465
    %v467 = vrcp.pop %v463
    %v468 = vrcp.pop %v466
    %v469 = vsel %vm417, %v310, 0.0
    %v470 = vsel %vm417, %v313, 0.0
    %v472 = vsel %vm357, %v458, 0
    %v475 = vsel %vm357, %v460, 0
    %477 = vmatpush.msra.mxu0 0.0
    %478 = vmatpush.msra.mxu0 0.0
    %479 = vmatpush.msra.mxu0 0.0
    %480 = vmatpush.msra.mxu0 0.0
    %481 = vmatpush.msra.mxu0 0.0
    %482 = vmatpush.msra.mxu0 0.0
    %483 = vmatpush.msra.mxu0 0.0
    %484 = vmatpush.msra.mxu0 0.0
    %485 = vmatpush.msra.mxu0 0.0
    %486 = vmatpush.msra.mxu0 0.0
    %487 = vmatpush.msra.mxu0 0.0
    %488 = vmatpush.msra.mxu0 0.0
    %489 = vmatpush.msra.mxu0 0.0
    %490 = vmatpush.msra.mxu0 0.0
    %491 = vmatpush.msra.mxu0 %v470
    %492 = vmatpush.msra.mxu0 %v469
    %493 = vmatmul.f32.gmra.mxu0 %v472
    %v494 = vpop.f32.mrf.mxu0
    %v495 = vadd.f32 0.0, %v494
    %496 = vmatmul.f32.gmra.mxu0 %v475
    %v497 = vpop.f32.mrf.mxu0
    %v498 = vadd.f32 0.0, %v497
    %499 = vdwg.mxu0
    %v500 = vmul.f32 %v495, %v467
    %v501 = vmul.f32 %v498, %v468
    %v502 = vadd.f32 %v411, %v500
    %v503 = vadd.f32 %v412, %v501
    %vm504 = vcmp.ge.s32.totalorder %v88, 16
    %vm505 = vcmp.lt.s32.totalorder %v88, 24
    %vm506 = vmand %vm504, %vm505
    %v507 = vsel %vm506, 1, 0
    %vm508 = vcmp.eq.s32.totalorder %v507, 1
    %v509 = vsel %vm508, %v262, 0.0
    %v510 = vsel %vm508, %v265, 0.0
    %v512 = vsel %vm237, %v509, 0
    %v515 = vsel %vm237, %v510, 0
    %517 = vmatpush.xpose.msra.mxu0 0.0
    %518 = vmatpush.xpose.msra.mxu0 0.0
    %519 = vmatpush.xpose.msra.mxu0 0.0
    %520 = vmatpush.xpose.msra.mxu0 0.0
    %521 = vmatpush.xpose.msra.mxu0 0.0
    %522 = vmatpush.xpose.msra.mxu0 0.0
    %523 = vmatpush.xpose.msra.mxu0 0.0
    %524 = vmatpush.xpose.msra.mxu0 0.0
    %525 = vmatpush.xpose.msra.mxu0 0.0
    %526 = vmatpush.xpose.msra.mxu0 0.0
    %527 = vmatpush.xpose.msra.mxu0 0.0
    %528 = vmatpush.xpose.msra.mxu0 0.0
    %529 = vmatpush.xpose.msra.mxu0 0.0
    %530 = vmatpush.xpose.msra.mxu0 0.0
    %531 = vmatpush.xpose.msra.mxu0 %v332
    %532 = vmatpush.xpose.msra.mxu0 %v329
    %533 = vmatmul.f32.gmra.mxu0 %v512
    %v534 = vpop.f32.mrf.mxu0
    %v535 = vadd.f32 %v222, %v534
    %536 = vmatmul.f32.gmra.mxu0 %v515
    %v537 = vpop.f32.mrf.mxu0
    %v538 = vadd.f32 %v223, %v537
    %539 = vdwg.mxu0
    %v540 = vsel %vm357, %v535, -inf
    %541 = vmax.xlane.f32.xlu0 %v540
    %v542 = vpop.xlane.xlu0 %541
    %v543 = vsel %vm357, %v538, -inf
    %544 = vmax.xlane.f32.xlu0 %v543
    %v545 = vpop.xlane.xlu0 %544
    %v546 = vsub.f32 %v535, %v542
    %v547 = vsub.f32 %v538, %v545
    %v548 = vmul.f32 %v546, 1.442695
    %v549 = vpow.pop %v548
    %v550 = vmul.f32 %v547, 1.442695
    %v551 = vpow.pop %v550
    %v552 = vsel %vm357, %v549, 0.0
    %553 = vadd.xlane.f32.xlu0 %v552
    %v554 = vpop.xlane.xlu0 %553
    %v555 = vsel %vm357, %v551, 0.0
    %556 = vadd.xlane.f32.xlu0 %v555
    %v557 = vpop.xlane.xlu0 %556
    %v558 = vrcp.pop %v554
    %v559 = vrcp.pop %v557
    %v560 = vsel %vm508, %v310, 0.0
    %v561 = vsel %vm508, %v313, 0.0
    %v563 = vsel %vm357, %v549, 0
    %v566 = vsel %vm357, %v551, 0
    %568 = vmatpush.msra.mxu0 0.0
    %569 = vmatpush.msra.mxu0 0.0
    %570 = vmatpush.msra.mxu0 0.0
    %571 = vmatpush.msra.mxu0 0.0
    %572 = vmatpush.msra.mxu0 0.0
    %573 = vmatpush.msra.mxu0 0.0
    %574 = vmatpush.msra.mxu0 0.0
    %575 = vmatpush.msra.mxu0 0.0
    %576 = vmatpush.msra.mxu0 0.0
    %577 = vmatpush.msra.mxu0 0.0
    %578 = vmatpush.msra.mxu0 0.0
    %579 = vmatpush.msra.mxu0 0.0
    %580 = vmatpush.msra.mxu0 0.0
    %581 = vmatpush.msra.mxu0 0.0
    %582 = vmatpush.msra.mxu0 %v561
    %583 = vmatpush.msra.mxu0 %v560
    %584 = vmatmul.f32.gmra.mxu0 %v563
    %v585 = vpop.f32.mrf.mxu0
    %v586 = vadd.f32 0.0, %v585
    %587 = vmatmul.f32.gmra.mxu0 %v566
    %v588 = vpop.f32.mrf.mxu0
    %v589 = vadd.f32 0.0, %v588
    %590 = vdwg.mxu0
    %v591 = vmul.f32 %v586, %v558
    %v592 = vmul.f32 %v589, %v559
    %v593 = vadd.f32 %v502, %v591
    %v594 = vadd.f32 %v503, %v592
    %vm595 = vcmp.ge.s32.totalorder %v88, 24
    %vm596 = vcmp.lt.s32.totalorder %v88, 32
    %vm597 = vmand %vm595, %vm596
    %v598 = vsel %vm597, 1, 0
    %vm599 = vcmp.eq.s32.totalorder %v598, 1
    %v600 = vsel %vm599, %v262, 0.0
    %v601 = vsel %vm599, %v265, 0.0
    %v603 = vsel %vm237, %v600, 0
    %v606 = vsel %vm237, %v601, 0
    %608 = vmatpush.xpose.msra.mxu0 0.0
    %609 = vmatpush.xpose.msra.mxu0 0.0
    %610 = vmatpush.xpose.msra.mxu0 0.0
    %611 = vmatpush.xpose.msra.mxu0 0.0
    %612 = vmatpush.xpose.msra.mxu0 0.0
    %613 = vmatpush.xpose.msra.mxu0 0.0
    %614 = vmatpush.xpose.msra.mxu0 0.0
    %615 = vmatpush.xpose.msra.mxu0 0.0
    %616 = vmatpush.xpose.msra.mxu0 0.0
    %617 = vmatpush.xpose.msra.mxu0 0.0
    %618 = vmatpush.xpose.msra.mxu0 0.0
    %619 = vmatpush.xpose.msra.mxu0 0.0
    %620 = vmatpush.xpose.msra.mxu0 0.0
    %621 = vmatpush.xpose.msra.mxu0 0.0
    %622 = vmatpush.xpose.msra.mxu0 %v332
    %623 = vmatpush.xpose.msra.mxu0 %v329
    %624 = vmatmul.f32.gmra.mxu0 %v603
    %v625 = vpop.f32.mrf.mxu0
    %v626 = vadd.f32 %v222, %v625
    %627 = vmatmul.f32.gmra.mxu0 %v606
    %v628 = vpop.f32.mrf.mxu0
    %v629 = vadd.f32 %v223, %v628
    %630 = vdwg.mxu0
    %v631 = vsel %vm357, %v626, -inf
    %632 = vmax.xlane.f32.xlu0 %v631
    %v633 = vpop.xlane.xlu0 %632
    %v634 = vsel %vm357, %v629, -inf
    %635 = vmax.xlane.f32.xlu0 %v634
    %v636 = vpop.xlane.xlu0 %635
    %v637 = vsub.f32 %v626, %v633
    %v638 = vsub.f32 %v629, %v636
    %v639 = vmul.f32 %v637, 1.442695
    %v640 = vpow.pop %v639
    %v641 = vmul.f32 %v638, 1.442695
    %v642 = vpow.pop %v641
    %v643 = vsel %vm357, %v640, 0.0
    %644 = vadd.xlane.f32.xlu0 %v643
    %v645 = vpop.xlane.xlu0 %644
    %v646 = vsel %vm357, %v642, 0.0
    %647 = vadd.xlane.f32.xlu0 %v646
    %v648 = vpop.xlane.xlu0 %647
    %v649 = vrcp.pop %v645
    %v650 = vrcp.pop %v648
    %v651 = vsel %vm599, %v310, 0.0
    %v652 = vsel %vm599, %v313, 0.0
    %v654 = vsel %vm357, %v640, 0
    %v657 = vsel %vm357, %v642, 0
    %659 = vmatpush.msra.mxu0 0.0
    %660 = vmatpush.msra.mxu0 0.0
    %661 = vmatpush.msra.mxu0 0.0
    %662 = vmatpush.msra.mxu0 0.0
    %663 = vmatpush.msra.mxu0 0.0
    %664 = vmatpush.msra.mxu0 0.0
    %665 = vmatpush.msra.mxu0 0.0
    %666 = vmatpush.msra.mxu0 0.0
    %667 = vmatpush.msra.mxu0 0.0
    %668 = vmatpush.msra.mxu0 0.0
    %669 = vmatpush.msra.mxu0 0.0
    %670 = vmatpush.msra.mxu0 0.0
    %671 = vmatpush.msra.mxu0 0.0
    %672 = vmatpush.msra.mxu0 0.0
    %673 = vmatpush.msra.mxu0 %v652
    %674 = vmatpush.msra.mxu0 %v651
    %675 = vmatmul.f32.gmra.mxu0 %v654
    %v676 = vpop.f32.mrf.mxu0
    %v677 = vadd.f32 0.0, %v676
    %678 = vmatmul.f32.gmra.mxu0 %v657
    %v679 = vpop.f32.mrf.mxu0
    %v680 = vadd.f32 0.0, %v679
    %681 = vdwg.mxu0
    %v682 = vmul.f32 %v677, %v649
    %v683 = vmul.f32 %v680, %v650
    %v684 = vadd.f32 %v593, %v682
    %v685 = vadd.f32 %v594, %v683
    %v686 = vld [vmem:[%s7] sm:$0xff]
    %v687 = vld [vmem:[%s7 + $0x8] sm:$0xff]
    %v688 = vld [vmem:[%s7 + $0x10] sm:$0xff]
    %v689 = vld [vmem:[%s7 + $0x18] sm:$0xff]
    %v690 = vperm.slane %v85, 5
    %v692 = vsel %vm237, %v684, 0
    %v695 = vsel %vm237, %v685, 0
    %697 = vmatpush.msra.mxu0 0.0
    %698 = vmatpush.msra.mxu0 0.0
    %699 = vmatpush.msra.mxu0 0.0
    %700 = vmatpush.msra.mxu0 0.0
    %701 = vmatpush.msra.mxu0 0.0
    %702 = vmatpush.msra.mxu0 0.0
    %703 = vmatpush.msra.mxu0 0.0
    %704 = vmatpush.msra.mxu0 0.0
    %705 = vmatpush.msra.mxu0 0.0
    %706 = vmatpush.msra.mxu0 0.0
    %707 = vmatpush.msra.mxu0 0.0
    %708 = vmatpush.msra.mxu0 0.0
    %709 = vmatpush.msra.mxu0 %v689
    %710 = vmatpush.msra.mxu0 %v688
    %711 = vmatpush.msra.mxu0 %v687
    %712 = vmatpush.msra.mxu0 %v686
    %713 = vmatmul.f32.gmra.mxu0 %v692
    %v714 = vpop.f32.mrf.mxu0
    %v715 = vadd.f32 %v690, %v714
    %716 = vmatmul.f32.gmra.mxu0 %v695
    %v717 = vpop.f32.mrf.mxu0
    %v718 = vadd.f32 %v690, %v717
    %719 = vdwg.mxu0
    %v720 = vadd.f32 %v208, %v715
    %v721 = vadd.f32 %v209, %v718
    %722 = vadd.xlane.f32.xlu0 %v720
    %v723 = vpop.xlane.xlu0 %722
    %724 = vadd.xlane.f32.xlu0 %v721
    %v725 = vpop.xlane.xlu0 %724
    %v726 = vmul.f32 %v723, 0.03125
    %v727 = vmul.f32 %v725, 0.03125
    %v728 = vmul.f32 %v720, %v720
    %v729 = vmul.f32 %v721, %v721
    %730 = vadd.xlane.f32.xlu0 %v728
    %v731 = vpop.xlane.xlu0 %730
    %732 = vadd.xlane.f32.xlu0 %v729
    %v733 = vpop.xlane.xlu0 %732
    %v734 = vmul.f32 %v731, 0.03125
    %v735 = vmul.f32 %v733, 0.03125
    %v736 = vmul.f32 %v726, %v726
    %v737 = vmul.f32 %v727, %v727
    %v738 = vsub.f32 %v734, %v736
    %v739 = vsub.f32 %v735, %v737
    %v740 = vmax.f32 %v738, 0.0
    %v741 = vmax.f32 %v739, 0.0
    %v742 = vsub.f32 %v720, %v726
    %v743 = vsub.f32 %v721, %v727
    %v744 = vadd.f32 %v740, 1e-05
    %v745 = vadd.f32 %v741, 1e-05
    %v746 = vrsqrt.pop %v744
    %v747 = vmul.f32 %v746, %v744
    %v748 = vmul.f32 %v747, %v746
    %v749 = vmul.f32 0.5, %v748
    %v750 = vsub.f32 1.5, %v749
    %v751 = vmul.f32 %v746, %v750
    %vm752 = vweird.f32 %v744
    %vm753 = vweird.f32 %v746
    %vm754 = vmor %vm752, %vm753
    %v755 = vsel %vm754, %v746, %v751
    %v756 = vrsqrt.pop %v745
    %v757 = vmul.f32 %v756, %v745
    %v758 = vmul.f32 %v757, %v756
    %v759 = vmul.f32 0.5, %v758
    %v760 = vsub.f32 1.5, %v759
    %v761 = vmul.f32 %v756, %v760
    %vm762 = vweird.f32 %v745
    %vm763 = vweird.f32 %v756
    %vm764 = vmor %vm762, %vm763
    %v765 = vsel %vm764, %v756, %v761
    %v766 = vmul.f32 %v742, %v755
    %v767 = vmul.f32 %v743, %v765
    %v768 = vperm.slane %v85, 6
    %v769 = vmul.f32 %v766, %v768
    %v770 = vmul.f32 %v767, %v768
    %v771 = vperm.slane %v85, 7
    %v772 = vadd.f32 %v769, %v771
    %v773 = vadd.f32 %v770, %v771
    %v774 = vld [vmem:[%s8] sm:$0xff]
    %v775 = vld [vmem:[%s8 + $0x8] sm:$0xff]
    %v776 = vld [vmem:[%s8 + $0x10] sm:$0xff]
    %v777 = vld [vmem:[%s8 + $0x18] sm:$0xff]
    %v778 = vperm.slane %v86, 0
    %v780 = vsel %vm237, %v772, 0
    %v783 = vsel %vm237, %v773, 0
    %785 = vmatpush.msra.mxu0 0.0
    %786 = vmatpush.msra.mxu0 0.0
    %787 = vmatpush.msra.mxu0 0.0
    %788 = vmatpush.msra.mxu0 0.0
    %789 = vmatpush.msra.mxu0 0.0
    %790 = vmatpush.msra.mxu0 0.0
    %791 = vmatpush.msra.mxu0 0.0
    %792 = vmatpush.msra.mxu0 0.0
    %793 = vmatpush.msra.mxu0 0.0
    %794 = vmatpush.msra.mxu0 0.0
    %795 = vmatpush.msra.mxu0 0.0
    %796 = vmatpush.msra.mxu0 0.0
    %797 = vmatpush.msra.mxu0 %v777
    %798 = vmatpush.msra.mxu0 %v776
    %799 = vmatpush.msra.mxu0 %v775
    %800 = vmatpush.msra.mxu0 %v774
    %801 = vmatmul.f32.gmra.mxu0 %v780
    %v802 = vpop.f32.mrf.mxu0
    %v803 = vadd.f32 %v778, %v802
    %804 = vmatmul.f32.gmra.mxu0 %v783
    %v805 = vpop.f32.mrf.mxu0
    %v806 = vadd.f32 %v778, %v805
    %807 = vdwg.mxu0
    %v808 = vmax.f32 %v803, 0.0
    %v809 = vmax.f32 %v806, 0.0
    %v810 = vld [vmem:[#allocation6] sm:$0xff]
    %v811 = vld [vmem:[#allocation6 + $0x8] sm:$0xff]
    %v812 = vld [vmem:[#allocation6 + $0x10] sm:$0xff]
    %v813 = vld [vmem:[#allocation6 + $0x18] sm:$0xff]
    %v814 = vld [vmem:[#allocation6 + $0x20] sm:$0xff]
    %v815 = vld [vmem:[#allocation6 + $0x28] sm:$0xff]
    %v816 = vld [vmem:[#allocation6 + $0x30] sm:$0xff]
    %v817 = vld [vmem:[#allocation6 + $0x38] sm:$0xff]
    %v818 = vld [vmem:[#allocation6 + $0x40] sm:$0xff]
    %v819 = vld [vmem:[#allocation6 + $0x48] sm:$0xff]
    %v820 = vld [vmem:[#allocation6 + $0x50] sm:$0xff]
    %v821 = vld [vmem:[#allocation6 + $0x58] sm:$0xff]
    %v822 = vld [vmem:[#allocation6 + $0x60] sm:$0xff]
    %v823 = vld [vmem:[#allocation6 + $0x68] sm:$0xff]
    %v824 = vld [vmem:[#allocation6 + $0x70] sm:$0xff]
    %v825 = vld [vmem:[#allocation6 + $0x78] sm:$0xff]
    %v826 = vperm.slane %v86, 1
    %827 = vmatpush.msra.mxu0 %v825
    %828 = vmatpush.msra.mxu0 %v824
    %829 = vmatpush.msra.mxu0 %v823
    %830 = vmatpush.msra.mxu0 %v822
    %831 = vmatpush.msra.mxu0 %v821
    %832 = vmatpush.msra.mxu0 %v820
    %833 = vmatpush.msra.mxu0 %v819
    %834 = vmatpush.msra.mxu0 %v818
    %835 = vmatpush.msra.mxu0 %v817
    %836 = vmatpush.msra.mxu0 %v816
    %837 = vmatpush.msra.mxu0 %v815
    %838 = vmatpush.msra.mxu0 %v814
    %839 = vmatpush.msra.mxu0 %v813
    %840 = vmatpush.msra.mxu0 %v812
    %841 = vmatpush.msra.mxu0 %v811
    %842 = vmatpush.msra.mxu0 %v810
    %843 = vmatmul.f32.gmra.mxu0 %v808
    %v844 = vpop.f32.mrf.mxu0
    %v845 = vadd.f32 %v826, %v844
    %846 = vmatmul.f32.gmra.mxu0 %v809
    %v847 = vpop.f32.mrf.mxu0
    %v848 = vadd.f32 %v826, %v847
    %849 = vdwg.mxu0
    %v850 = vadd.f32 %v772, %v845
    %v851 = vadd.f32 %v773, %v848
    %852 = vadd.xlane.f32.xlu0 %v850
    %v853 = vpop.xlane.xlu0 %852
    %854 = vadd.xlane.f32.xlu0 %v851
    %v855 = vpop.xlane.xlu0 %854
    %v856 = vmul.f32 %v853, 0.03125
    %v857 = vmul.f32 %v855, 0.03125
    %v858 = vmul.f32 %v850, %v850
    %v859 = vmul.f32 %v851, %v851
    %860 = vadd.xlane.f32.xlu0 %v858
    %v861 = vpop.xlane.xlu0 %860
    %862 = vadd.xlane.f32.xlu0 %v859
    %v863 = vpop.xlane.xlu0 %862
    %v864 = vmul.f32 %v861, 0.03125
    %v865 = vmul.f32 %v863, 0.03125
    %v866 = vmul.f32 %v856, %v856
    %v867 = vmul.f32 %v857, %v857
    %v868 = vsub.f32 %v864, %v866
    %v869 = vsub.f32 %v865, %v867
    %v870 = vmax.f32 %v868, 0.0
    %v871 = vmax.f32 %v869, 0.0
    %v872 = vsub.f32 %v850, %v856
    %v873 = vsub.f32 %v851, %v857
    %v874 = vadd.f32 %v870, 1e-05
    %v875 = vadd.f32 %v871, 1e-05
    %v876 = vrsqrt.pop %v874
    %v877 = vmul.f32 %v876, %v874
    %v878 = vmul.f32 %v877, %v876
    %v879 = vmul.f32 0.5, %v878
    %v880 = vsub.f32 1.5, %v879
    %v881 = vmul.f32 %v876, %v880
    %vm882 = vweird.f32 %v874
    %vm883 = vweird.f32 %v876
    %vm884 = vmor %vm882, %vm883
    %v885 = vsel %vm884, %v876, %v881
    %v886 = vrsqrt.pop %v875
    %v887 = vmul.f32 %v886, %v875
    %v888 = vmul.f32 %v887, %v886
    %v889 = vmul.f32 0.5, %v888
    %v890 = vsub.f32 1.5, %v889
    %v891 = vmul.f32 %v886, %v890
    %vm892 = vweird.f32 %v875
    %vm893 = vweird.f32 %v886
    %vm894 = vmor %vm892, %vm893
    %v895 = vsel %vm894, %v886, %v891
    %v896 = vmul.f32 %v872, %v885
    %v897 = vmul.f32 %v873, %v895
    %v898 = vperm.slane %v86, 2
    %v899 = vmul.f32 %v896, %v898
    %v900 = vmul.f32 %v897, %v898
    %v901 = vperm.slane %v86, 3
    %v902 = vadd.f32 %v899, %v901
    %v903 = vadd.f32 %v900, %v901
    %904 = vst [vmem:[%s11] sm:$0xff] %v902
    %905 = vst [vmem:[%s11 + $0x8] sm:$0xff] %v903
    // Predicated region
    $region58: #{_lambda_.1} parent=1 // pred_check
      _
    $region59: #{_lambda_.1} parent=1 // pred_check_branch
      %907 = sbr.rel (0) target = $region61
    $region60: #{_lambda_.1} parent=1 // pred_region
      _
    $region61: #{_lambda_.1} parent=1 // pred_fallthru
      _
    // Predicated region
    $region62: #{_lambda_.1} parent=1 // pred_check
      _
    $region63: #{_lambda_.1} parent=1 // pred_check_branch
      %909 = sbr.rel (0) target = $region65
    $region64: #{_lambda_.1} parent=1 // pred_region
      _
    $region65: #{_lambda_.1} parent=1 // pred_fallthru
      _
    %910 = vsyncpa [#allocation3], 1
    %911 = vsyncpa [#allocation5], 1

</llo_original>
